<compile_context>
chip_gen: v6e
topology: v6e:2x2x1
jax: 0.10.0
libtpu: 0.0.40
codegen_flags: <defaults>
</compile_context>

<pallas_src>
import functools

import jax
import jax.numpy as jnp
from jax.experimental import pallas as pl
from jax.experimental.pallas import tpu as pltpu

SELU_ALPHA = 1.6732632423543772
SELU_SCALE = 1.0507009873554805
BN_EPS = 1e-5

ROW_TILE_TARGET = 256                    # rows per block for row-tiled kernels
VMEM_LIMIT_BYTES = 48 * 1024 * 1024      # > v5e 16MiB default, < v7x 64MiB phys


def _selu(x):
    return SELU_SCALE * jnp.where(x > 0, x, SELU_ALPHA * (jnp.exp(x) - 1.0))


def _round_up(x, m):
    return ((x + m - 1) // m) * m


def _row_tile(m, target=ROW_TILE_TARGET):
    """Largest row tile <= target that divides m and is a multiple of 8
    (falls back to a single block only if no such divisor exists)."""
    for tm in range(min(target, m), 0, -1):
        if m % tm == 0 and (tm % 8 == 0 or tm == m):
            return tm
    return m


def _compiler_params(n_axes=1):
    return pltpu.CompilerParams(
        dimension_semantics=("parallel",) * n_axes,
        vmem_limit_bytes=VMEM_LIMIT_BYTES)


# ---------------------------------------------------------------------------
# Kernels
# ---------------------------------------------------------------------------

def _patch_embed_kernel(x_ref, w_ref, b_ref, o_ref, stat_ref):
    # x (tm, Kp) bf16, w (Kp, C) bf16 resident, b (1, C) f32.
    y = jnp.dot(x_ref[...], w_ref[...], preferred_element_type=jnp.float32)
    y = _selu(y + b_ref[...])
    o_ref[...] = y
    # per-tile partial BN statistics (fused stats -> no extra HBM pass)
    stat_ref[0, 0:1, :] = jnp.sum(y, axis=0, keepdims=True)
    stat_ref[0, 1:2, :] = jnp.sum(y * y, axis=0, keepdims=True)


def _pointwise_kernel(t_ref, ts_ref, tf_ref, r_ref, rs_ref, rf_ref,
                      w_ref, b_ref, o_ref, stat_ref):
    # BN-affine prologue for the depthwise branch + inner residual (BN-affine
    # of the block input), then 1x1 conv (matmul) + SELU + partial BN stats.
    x1 = (t_ref[...] * ts_ref[...] + tf_ref[...]
          + r_ref[...] * rs_ref[...] + rf_ref[...])
    y = jnp.dot(x1.astype(jnp.bfloat16), w_ref[...],
                preferred_element_type=jnp.float32)
    y = _selu(y + b_ref[...])
    o_ref[...] = y
    stat_ref[0, 0:1, :] = jnp.sum(y, axis=0, keepdims=True)
    stat_ref[0, 1:2, :] = jnp.sum(y * y, axis=0, keepdims=True)


def _dwconv_kernel(x_ref, s_ref, f_ref, k_ref, b_ref, o_ref, stat_ref, xp_ref):
    # x (1, Hp, Wp, C): raw previous-stage activations.  BN affine of the
    # previous stage is applied in-kernel, the zero 'same' padding is realised
    # in a VMEM scratch (so padded border is zero *after* the affine), then a
    # 9-tap depthwise conv + SELU; emits partial BN stats of the result.
    _, Hp, Wp, C = x_ref.shape
    xbn = x_ref[0] * s_ref[0] + f_ref[0]                       # (Hp, Wp, C)
    xp_ref[...] = jnp.zeros(xp_ref.shape, xp_ref.dtype)
    xp_ref[1:Hp + 1, 1:Wp + 1, :] = xbn
    xv = xp_ref[...]                                           # (Hp+2, Wp+2, C)

    # hoist the 9 tap loads out of the accumulation loop
    taps = [k_ref[dh, dw] for dh in range(3) for dw in range(3)]

    acc = jnp.zeros((Hp, Wp, C), jnp.float32)                  # f32 accumulator
    i = 0
    for dh in range(3):
        for dw in range(3):
            acc = acc + xv[dh:dh + Hp, dw:dw + Wp, :] * taps[i]
            i += 1
    t = _selu(acc + b_ref[0])
    o_ref[0] = t

    rs = jnp.sum(t, axis=0)                                    # (Wp, C)
    rq = jnp.sum(t * t, axis=0)
    stat_ref[0, 0:1, :] = jnp.sum(rs, axis=0, keepdims=True)
    stat_ref[0, 1:2, :] = jnp.sum(rq, axis=0, keepdims=True)


def _pool_kernel(p_ref, ps_ref, pf_ref, y_ref, ys_ref, yf_ref, o_ref):
    # Fused:  BN(p_last) + BN(first_conv) outer residual + 2x2 max-pool.
    # p_ref / y_ref blocks are (1, Hp, Wo, 2*C): the two horizontally adjacent
    # pixels of every pooling window are packed along the lane (channel) axis
    # by a free reshape in the wrapper, so W-pooling is a lane slice + maximum
    # and H-pooling is a leading-axis reshape + maximum.
    _, Ho, Wo, C = o_ref.shape
    sp, fp = ps_ref[0], pf_ref[0]
    sy, fy = ys_ref[0], yf_ref[0]
    h = 2 * Ho                                   # floor-crop odd Hp like torch
    a = p_ref[0, 0:h, :, 0:C] * sp + fp + y_ref[0, 0:h, :, 0:C] * sy + fy
    b = (p_ref[0, 0:h, :, C:2 * C] * sp + fp
         + y_ref[0, 0:h, :, C:2 * C] * sy + fy)
    mw = jnp.maximum(a, b)                       # (2*Ho, Wo, C): W-pooled
    mh = mw.reshape(Ho, 2, Wo, C)                # free leading-axis split
    o_ref[0] = jnp.maximum(mh[:, 0], mh[:, 1])   # H-pooled


# ---------------------------------------------------------------------------
# pallas_call wrappers
# ---------------------------------------------------------------------------

def patch_embed(patches_bf16, w_bf16, bias):
    M, Kp = patches_bf16.shape
    C = w_bf16.shape[1]
    tm = _row_tile(M)
    nt = M // tm
    return pl.pallas_call(
        _patch_embed_kernel,
        out_shape=(jax.ShapeDtypeStruct((M, C), jnp.float32),
                   jax.ShapeDtypeStruct((nt, 2, C), jnp.float32)),
        grid=(nt,),
        in_specs=[pl.BlockSpec((tm, Kp), lambda i: (i, 0)),
                  pl.BlockSpec((Kp, C), lambda i: (0, 0)),
                  pl.BlockSpec((1, C), lambda i: (0, 0))],
        out_specs=(pl.BlockSpec((tm, C), lambda i: (i, 0)),
                   pl.BlockSpec((1, 2, C), lambda i: (i, 0, 0))),
        compiler_params=_compiler_params(),
    )(patches_bf16, w_bf16, bias.reshape(1, C))


def pointwise_conv(t, t_scale, t_shift, r, r_scale, r_shift, w_bf16, bias):
    M, C = t.shape
    tm = _row_tile(M)
    nt = M // tm
    vec = pl.BlockSpec((1, C), lambda i: (0, 0))
    return pl.pallas_call(
        _pointwise_kernel,
        out_shape=(jax.ShapeDtypeStruct((M, C), jnp.float32),
                   jax.ShapeDtypeStruct((nt, 2, C), jnp.float32)),
        grid=(nt,),
        in_specs=[pl.BlockSpec((tm, C), lambda i: (i, 0)), vec, vec,
                  pl.BlockSpec((tm, C), lambda i: (i, 0)), vec, vec,
                  pl.BlockSpec((C, C), lambda i: (0, 0)),   # resident weight
                  vec],
        out_specs=(pl.BlockSpec((tm, C), lambda i: (i, 0)),
                   pl.BlockSpec((1, 2, C), lambda i: (i, 0, 0))),
        compiler_params=_compiler_params(),
    )(t, t_scale, t_shift, r, r_scale, r_shift, w_bf16, bias.reshape(1, C))


def dwconv3x3(x4, scale, shift, k, bias):
    # Grid over batch only; for very small B this leaves a v7x TensorCore idle
    # (an (B, H-row-block) grid with halo DMA would fix that).
    B, Hp, Wp, C = x4.shape
    vec = pl.BlockSpec((1, C), lambda b: (0, 0))
    return pl.pallas_call(
        _dwconv_kernel,
        out_shape=(jax.ShapeDtypeStruct((B, Hp, Wp, C), jnp.float32),
                   jax.ShapeDtypeStruct((B, 2, C), jnp.float32)),
        grid=(B,),
        in_specs=[pl.BlockSpec((1, Hp, Wp, C), lambda b: (b, 0, 0, 0)),
                  vec, vec,
                  pl.BlockSpec((3, 3, C), lambda b: (0, 0, 0)),
                  vec],
        out_specs=(pl.BlockSpec((1, Hp, Wp, C), lambda b: (b, 0, 0, 0)),
                   pl.BlockSpec((1, 2, C), lambda b: (b, 0, 0))),
        scratch_shapes=[pltpu.VMEM((Hp + 2, Wp + 2, C), jnp.float32)],
        compiler_params=_compiler_params(),
    )(x4, scale, shift, k, bias.reshape(1, C))


def maxpool_affine_res(p4, p_scale, p_shift, y4, y_scale, y_shift):
    B, Hp, Wp, C = p4.shape
    Ho, Wo = Hp // 2, Wp // 2
    if Wp != 2 * Wo:                       # torch MaxPool2d floor behaviour
        p4 = p4[:, :, :2 * Wo, :]
        y4 = y4[:, :, :2 * Wo, :]
    # Pack the two horizontally adjacent pixels of each window onto the lane
    # axis; contiguous row-major reshape -> free, lets the kernel read each
    # element exactly once.
    p2 = p4.reshape(B, Hp, Wo, 2 * C)
    y2 = y4.reshape(B, Hp, Wo, 2 * C)
    vec = pl.BlockSpec((1, C), lambda b: (0, 0))
    return pl.pallas_call(
        _pool_kernel,
        out_shape=jax.ShapeDtypeStruct((B, Ho, Wo, C), jnp.float32),
        grid=(B,),
        in_specs=[pl.BlockSpec((1, Hp, Wo, 2 * C), lambda b: (b, 0, 0, 0)),
                  vec, vec,
                  pl.BlockSpec((1, Hp, Wo, 2 * C), lambda b: (b, 0, 0, 0)),
                  vec, vec],
        out_specs=pl.BlockSpec((1, Ho, Wo, C), lambda b: (b, 0, 0, 0)),
        compiler_params=_compiler_params(),
    )(p2, p_scale, p_shift, y2, y_scale, y_shift)


# ---------------------------------------------------------------------------
# BN finalisation (tiny per-channel reduction over per-tile partials, in glue)
# ---------------------------------------------------------------------------

def _finalize_bn(stats, count, gamma, beta):
    s = jnp.sum(stats[:, 0, :], axis=0)
    ss = jnp.sum(stats[:, 1, :], axis=0)
    mean = s / count
    var = jnp.maximum(ss / count - mean * mean, 0.0)   # biased (training mode)
    inv = jax.lax.rsqrt(var + BN_EPS)
    scale = gamma * inv
    shift = beta - mean * scale
    C = scale.shape[0]
    return scale.reshape(1, C), shift.reshape(1, C)


# ---------------------------------------------------------------------------
# Forward pass
# ---------------------------------------------------------------------------

@functools.partial(jax.jit, static_argnames=("sfa_width",))
def convmixer_maxpool_forward(x_nchw, params, *, sfa_width):
    ps = sfa_width
    x = jnp.transpose(x_nchw, (0, 2, 3, 1)).astype(jnp.float32)   # NCHW -> NHWC
    B, H, W, Cin = x.shape
    Hp, Wp = H // ps, W // ps
    dim = params["b1"].shape[0]
    M = B * Hp * Wp

    # ---- first_conv: non-overlapping ps x ps patches -> matmul + SELU ------
    K = ps * ps * Cin
    Kp = _round_up(K, 128)                 # full MXU pass (K=100 -> 128)
    patches = (x.reshape(B, Hp, ps, Wp, ps, Cin)
                .transpose(0, 1, 3, 2, 4, 5)
                .reshape(M, K))
    patches = jnp.pad(patches, ((0, 0), (0, Kp - K))).astype(jnp.bfloat16)
    w1 = jnp.pad(params["w1"], ((0, Kp - K), (0, 0))).astype(jnp.bfloat16)

    y, y_stats = patch_embed(patches, w1, params["b1"])           # raw (M, dim)
    y_scale, y_shift = _finalize_bn(y_stats, M, params["g1"], params["be1"])

    # ---- mixer blocks (carry raw activations + their BN affine) ------------
    cur, cur_scale, cur_shift = y, y_scale, y_shift
    for blk in params["blocks"]:
        t4, t_stats = dwconv3x3(cur.reshape(B, Hp, Wp, dim),
                                cur_scale, cur_shift, blk["wd"], blk["bd"])
        t_scale, t_shift = _finalize_bn(t_stats, M, blk["gd"], blk["bed"])
        p, p_stats = pointwise_conv(t4.reshape(M, dim), t_scale, t_shift,
                                    cur, cur_scale, cur_shift,
                                    blk["wp"].astype(jnp.bfloat16), blk["bp"])
        cur_scale, cur_shift = _finalize_bn(p_stats, M, blk["gp"], blk["bep"])
        cur = p

    # ---- outer residual + final BN + 2x2 max-pool, fused -------------------
    pooled = maxpool_affine_res(cur.reshape(B, Hp, Wp, dim), cur_scale,
                                cur_shift, y.reshape(B, Hp, Wp, dim),
                                y_scale, y_shift)
    Ho, Wo = Hp // 2, Wp // 2
    return pooled.reshape(B, Ho * Wo, dim)       # == flatten(2,3).permute(0,2,1)


# ---------------------------------------------------------------------------
# Deterministic parameter init (synthetic; shapes mirror the torch module)
# ---------------------------------------------------------------------------

def init_params(seed, channels, dim, depth, ps=5, ks=3):
    key = jax.random.PRNGKey(seed)
    keys = iter(jax.random.split(key, 4 + depth * 8))
    nk = lambda: next(keys)
    params = {
        # torch Conv2d(channels, dim, ps, stride=ps).weight is (dim,channels,ps,ps);
        # stored pre-transposed to (ps*ps*channels, dim) for the patch matmul.
        "w1": jax.random.normal(nk(), (ps * ps * channels, dim), jnp.float32)
              * (1.0 / (ps * ps * channels) ** 0.5),
        "b1": 0.1 * jax.random.normal(nk(), (dim,), jnp.float32),
        "g1": 1.0 + 0.1 * jax.random.normal(nk(), (dim,), jnp.float32),
        "be1": 0.1 * jax.random.normal(nk(), (dim,), jnp.float32),
        "blocks": [],
    }
    for _ in range(depth):
        params["blocks"].append({
            # torch depthwise weight (dim,1,ks,ks) stored as (ks,ks,dim)
            "wd": jax.random.normal(nk(), (ks, ks, dim), jnp.float32)
                  * (1.0 / (ks * ks) ** 0.5),
            "bd": 0.1 * jax.random.normal(nk(), (dim,), jnp.float32),
            "gd": 1.0 + 0.1 * jax.random.normal(nk(), (dim,), jnp.float32),
            "bed": 0.1 * jax.random.normal(nk(), (dim,), jnp.float32),
            # torch 1x1 weight (dim,dim,1,1) stored as (dim_in, dim_out)
            "wp": jax.random.normal(nk(), (dim, dim), jnp.float32)
                  * (1.0 / dim ** 0.5),
            "bp": 0.1 * jax.random.normal(nk(), (dim,), jnp.float32),
            "gp": 1.0 + 0.1 * jax.random.normal(nk(), (dim,), jnp.float32),
            "bep": 0.1 * jax.random.normal(nk(), (dim,), jnp.float32),
        })
    return params


if __name__ == "__main__":
    channels, dim, depth = 4, 16, 2
    sfa_width, kernel_size = 5, 3
    B, H, W = 2, 20, 20   # 20/5 = 4 -> mixer grid 4x4 -> pool -> 2x2 -> 4 tokens

    params = init_params(0, channels, dim, depth, ps=sfa_width, ks=kernel_size)
    x = jax.random.normal(jax.random.PRNGKey(0), (B, channels, H, W), jnp.float32)

    out = convmixer_maxpool_forward(x, params, sfa_width=sfa_width)
    out = jax.block_until_ready(out)

    Ho, Wo = (H // sfa_width) // 2, (W // sfa_width) // 2
    assert out.shape == (B, Ho * Wo, dim), out.shape
    assert bool(jnp.all(jnp.isfinite(out)))
    print("KERNEL_OK")
</pallas_src>

<mosaic_0001>
module attributes {stable_mosaic.version = 11 : i64} {
  func.func @_pointwise_kernel(%arg0: i32, %arg1: memref<32x16xf32, #tpu.memory_space<vmem>>, %arg2: memref<1x16xf32, #tpu.memory_space<vmem>>, %arg3: memref<1x16xf32, #tpu.memory_space<vmem>>, %arg4: memref<32x16xf32, #tpu.memory_space<vmem>>, %arg5: memref<1x16xf32, #tpu.memory_space<vmem>>, %arg6: memref<1x16xf32, #tpu.memory_space<vmem>>, %arg7: memref<16x16xbf16, #tpu.memory_space<vmem>>, %arg8: memref<1x16xf32, #tpu.memory_space<vmem>>, %arg9: memref<32x16xf32, #tpu.memory_space<vmem>>, %arg10: memref<1x2x16xf32, #tpu.memory_space<vmem>>) attributes {dimension_semantics = [#tpu.dimension_semantics<parallel>], iteration_bounds = array<i64: 1>, scalar_prefetch = 0 : i64, scratch_operands = 0 : i64, tpu.core_type = #tpu.core_type<tc>, window_params = [{transform_indices = @transform_0, window_bounds = array<i64: 32, 16>}, {pipeline_mode = #tpu.pipeline_mode<synchronous>, transform_indices = @transform_1, window_bounds = array<i64: 1, 16>}, {pipeline_mode = #tpu.pipeline_mode<synchronous>, transform_indices = @transform_2, window_bounds = array<i64: 1, 16>}, {transform_indices = @transform_3, window_bounds = array<i64: 32, 16>}, {pipeline_mode = #tpu.pipeline_mode<synchronous>, transform_indices = @transform_4, window_bounds = array<i64: 1, 16>}, {pipeline_mode = #tpu.pipeline_mode<synchronous>, transform_indices = @transform_5, window_bounds = array<i64: 1, 16>}, {pipeline_mode = #tpu.pipeline_mode<synchronous>, transform_indices = @transform_6, window_bounds = array<i64: 16, 16>}, {pipeline_mode = #tpu.pipeline_mode<synchronous>, transform_indices = @transform_7, window_bounds = array<i64: 1, 16>}, {transform_indices = @transform_8, window_bounds = array<i64: 32, 16>}, {transform_indices = @transform_9, window_bounds = array<i64: 1, 2, 16>}]} {
    %c0 = arith.constant 0 : index
    %c0_0 = arith.constant 0 : index
    %0 = vector.load %arg1[%c0, %c0_0] : memref<32x16xf32, #tpu.memory_space<vmem>>, vector<32x16xf32>
    %c0_1 = arith.constant 0 : index
    %c0_2 = arith.constant 0 : index
    %1 = vector.load %arg2[%c0_1, %c0_2] : memref<1x16xf32, #tpu.memory_space<vmem>>, vector<1x16xf32>
    %2 = vector.broadcast %1 : vector<1x16xf32> to vector<32x16xf32>
    %3 = arith.mulf %0, %2 : vector<32x16xf32>
    %c0_3 = arith.constant 0 : index
    %c0_4 = arith.constant 0 : index
    %4 = vector.load %arg3[%c0_3, %c0_4] : memref<1x16xf32, #tpu.memory_space<vmem>>, vector<1x16xf32>
    %5 = vector.broadcast %4 : vector<1x16xf32> to vector<32x16xf32>
    %6 = arith.addf %3, %5 : vector<32x16xf32>
    %c0_5 = arith.constant 0 : index
    %c0_6 = arith.constant 0 : index
    %7 = vector.load %arg4[%c0_5, %c0_6] : memref<32x16xf32, #tpu.memory_space<vmem>>, vector<32x16xf32>
    %c0_7 = arith.constant 0 : index
    %c0_8 = arith.constant 0 : index
    %8 = vector.load %arg5[%c0_7, %c0_8] : memref<1x16xf32, #tpu.memory_space<vmem>>, vector<1x16xf32>
    %9 = vector.broadcast %8 : vector<1x16xf32> to vector<32x16xf32>
    %10 = arith.mulf %7, %9 : vector<32x16xf32>
    %11 = arith.addf %6, %10 : vector<32x16xf32>
    %c0_9 = arith.constant 0 : index
    %c0_10 = arith.constant 0 : index
    %12 = vector.load %arg6[%c0_9, %c0_10] : memref<1x16xf32, #tpu.memory_space<vmem>>, vector<1x16xf32>
    %13 = vector.broadcast %12 : vector<1x16xf32> to vector<32x16xf32>
    %14 = arith.addf %11, %13 : vector<32x16xf32>
    %15 = arith.truncf %14 : vector<32x16xf32> to vector<32x16xbf16>
    %c0_11 = arith.constant 0 : index
    %c0_12 = arith.constant 0 : index
    %16 = vector.load %arg7[%c0_11, %c0_12] : memref<16x16xbf16, #tpu.memory_space<vmem>>, vector<16x16xbf16>
    %cst = arith.constant dense<0.000000e+00> : vector<32x16xf32>
    %17 = tpu.matmul %15, %16, %cst {dimension_numbers = #tpu.dot_dimension_numbers<[1], [0], [0], [1], [0, 0, 1, 1], [], []>} : vector<32x16xbf16>, vector<16x16xbf16>, vector<32x16xf32> -> vector<32x16xf32>
    %c0_13 = arith.constant 0 : index
    %c0_14 = arith.constant 0 : index
    %18 = vector.load %arg8[%c0_13, %c0_14] : memref<1x16xf32, #tpu.memory_space<vmem>>, vector<1x16xf32>
    %19 = vector.broadcast %18 : vector<1x16xf32> to vector<32x16xf32>
    %20 = arith.addf %17, %19 : vector<32x16xf32>
    %cst_15 = arith.constant 0.000000e+00 : f32
    %21 = vector.broadcast %cst_15 : f32 to vector<32x16xf32>
    %22 = arith.cmpf ogt, %20, %21 : vector<32x16xf32>
    %23 = math.exp %20 : vector<32x16xf32>
    %cst_16 = arith.constant 1.000000e+00 : f32
    %24 = vector.broadcast %cst_16 : f32 to vector<32x16xf32>
    %25 = arith.subf %23, %24 : vector<32x16xf32>
    %cst_17 = arith.constant 1.67326319 : f32
    %26 = vector.broadcast %cst_17 : f32 to vector<32x16xf32>
    %27 = arith.mulf %26, %25 : vector<32x16xf32>
    %28 = arith.select %22, %20, %27 : vector<32x16xi1>, vector<32x16xf32>
    %cst_18 = arith.constant 1.05070102 : f32
    %29 = vector.broadcast %cst_18 : f32 to vector<32x16xf32>
    %30 = arith.mulf %29, %28 : vector<32x16xf32>
    %c0_19 = arith.constant 0 : index
    %c0_20 = arith.constant 0 : index
    %31 = vector.load %arg9[%c0_19, %c0_20] : memref<32x16xf32, #tpu.memory_space<vmem>>, vector<32x16xf32>
    tpu.vector_store %arg9[%c0_19, %c0_20], %30 {strides = array<i32>} : memref<32x16xf32, #tpu.memory_space<vmem>>, vector<32x16xf32>,
    %cst_21 = arith.constant dense<0.000000e+00> : vector<16xf32>
    %32 = vector.multi_reduction <add>, %30, %cst_21 [0] : vector<32x16xf32> to vector<16xf32>
    %33 = vector.shape_cast %32 : vector<16xf32> to vector<1x16xf32>
    %c0_22 = arith.constant 0 : index
    %c0_23 = arith.constant 0 : index
    %c0_24 = arith.constant 0 : index
    %34 = vector.load %arg10[%c0_22, %c0_23, %c0_24] : memref<1x2x16xf32, #tpu.memory_space<vmem>>, vector<1x1x16xf32>
    %35 = vector.shape_cast %34 : vector<1x1x16xf32> to vector<1x16xf32>
    %36 = vector.shape_cast %33 : vector<1x16xf32> to vector<1x1x16xf32>
    tpu.vector_store %arg10[%c0_22, %c0_23, %c0_24], %36 {strides = array<i32>} : memref<1x2x16xf32, #tpu.memory_space<vmem>>, vector<1x1x16xf32>,
    %37 = arith.mulf %30, %30 : vector<32x16xf32>
    %cst_25 = arith.constant dense<0.000000e+00> : vector<16xf32>
    %38 = vector.multi_reduction <add>, %37, %cst_25 [0] : vector<32x16xf32> to vector<16xf32>
    %39 = vector.shape_cast %38 : vector<16xf32> to vector<1x16xf32>
    %c0_26 = arith.constant 0 : index
    %c1 = arith.constant 1 : index
    %c0_27 = arith.constant 0 : index
    %40 = vector.load %arg10[%c0_26, %c1, %c0_27] : memref<1x2x16xf32, #tpu.memory_space<vmem>>, vector<1x1x16xf32>
    %41 = vector.shape_cast %40 : vector<1x1x16xf32> to vector<1x16xf32>
    %42 = vector.shape_cast %39 : vector<1x16xf32> to vector<1x1x16xf32>
    tpu.vector_store %arg10[%c0_26, %c1, %c0_27], %42 {strides = array<i32>} : memref<1x2x16xf32, #tpu.memory_space<vmem>>, vector<1x1x16xf32>,
    return
  }
  func.func @transform_0(%arg0: i32) -> (i32, i32) {
    %c0_i32 = arith.constant 0 : i32
    %c0_i32_0 = arith.constant 0 : i32
    return %arg0, %c0_i32 : i32, i32
  }
  func.func @transform_1(%arg0: i32) -> (i32, i32) {
    %c0_i32 = arith.constant 0 : i32
    %c0_i32_0 = arith.constant 0 : i32
    %c0_i32_1 = arith.constant 0 : i32
    return %c0_i32, %c0_i32_0 : i32, i32
  }
  func.func @transform_2(%arg0: i32) -> (i32, i32) {
    %c0_i32 = arith.constant 0 : i32
    %c0_i32_0 = arith.constant 0 : i32
    %c0_i32_1 = arith.constant 0 : i32
    return %c0_i32, %c0_i32_0 : i32, i32
  }
  func.func @transform_3(%arg0: i32) -> (i32, i32) {
    %c0_i32 = arith.constant 0 : i32
    %c0_i32_0 = arith.constant 0 : i32
    return %arg0, %c0_i32 : i32, i32
  }
  func.func @transform_4(%arg0: i32) -> (i32, i32) {
    %c0_i32 = arith.constant 0 : i32
    %c0_i32_0 = arith.constant 0 : i32
    %c0_i32_1 = arith.constant 0 : i32
    return %c0_i32, %c0_i32_0 : i32, i32
  }
  func.func @transform_5(%arg0: i32) -> (i32, i32) {
    %c0_i32 = arith.constant 0 : i32
    %c0_i32_0 = arith.constant 0 : i32
    %c0_i32_1 = arith.constant 0 : i32
    return %c0_i32, %c0_i32_0 : i32, i32
  }
  func.func @transform_6(%arg0: i32) -> (i32, i32) {
    %c0_i32 = arith.constant 0 : i32
    %c0_i32_0 = arith.constant 0 : i32
    %c0_i32_1 = arith.constant 0 : i32
    return %c0_i32, %c0_i32_0 : i32, i32
  }
  func.func @transform_7(%arg0: i32) -> (i32, i32) {
    %c0_i32 = arith.constant 0 : i32
    %c0_i32_0 = arith.constant 0 : i32
    %c0_i32_1 = arith.constant 0 : i32
    return %c0_i32, %c0_i32_0 : i32, i32
  }
  func.func @transform_8(%arg0: i32) -> (i32, i32) {
    %c0_i32 = arith.constant 0 : i32
    %c0_i32_0 = arith.constant 0 : i32
    return %arg0, %c0_i32 : i32, i32
  }
  func.func @transform_9(%arg0: i32) -> (i32, i32, i32) {
    %c0_i32 = arith.constant 0 : i32
    %c0_i32_0 = arith.constant 0 : i32
    %c0_i32_1 = arith.constant 0 : i32
    return %arg0, %c0_i32, %c0_i32_0 : i32, i32, i32
  }
}

module attributes {stable_mosaic.version = 11 : i64} {
  func.func @_dwconv_kernel(%arg0: i32, %arg1: memref<1x4x4x16xf32, #tpu.memory_space<vmem>>, %arg2: memref<1x16xf32, #tpu.memory_space<vmem>>, %arg3: memref<1x16xf32, #tpu.memory_space<vmem>>, %arg4: memref<3x3x16xf32, #tpu.memory_space<vmem>>, %arg5: memref<1x16xf32, #tpu.memory_space<vmem>>, %arg6: memref<1x4x4x16xf32, #tpu.memory_space<vmem>>, %arg7: memref<1x2x16xf32, #tpu.memory_space<vmem>>, %arg8: memref<6x6x16xf32, #tpu.memory_space<vmem>>) attributes {dimension_semantics = [#tpu.dimension_semantics<parallel>], iteration_bounds = array<i64: 2>, scalar_prefetch = 0 : i64, scratch_operands = 1 : i64, tpu.core_type = #tpu.core_type<tc>, window_params = [{transform_indices = @transform_0, window_bounds = array<i64: 1, 4, 4, 16>}, {pipeline_mode = #tpu.pipeline_mode<synchronous>, transform_indices = @transform_1, window_bounds = array<i64: 1, 16>}, {pipeline_mode = #tpu.pipeline_mode<synchronous>, transform_indices = @transform_2, window_bounds = array<i64: 1, 16>}, {pipeline_mode = #tpu.pipeline_mode<synchronous>, transform_indices = @transform_3, window_bounds = array<i64: 3, 3, 16>}, {pipeline_mode = #tpu.pipeline_mode<synchronous>, transform_indices = @transform_4, window_bounds = array<i64: 1, 16>}, {transform_indices = @transform_5, window_bounds = array<i64: 1, 4, 4, 16>}, {transform_indices = @transform_6, window_bounds = array<i64: 1, 2, 16>}]} {
    %c0 = arith.constant 0 : index
    %c0_0 = arith.constant 0 : index
    %c0_1 = arith.constant 0 : index
    %c0_2 = arith.constant 0 : index
    %0 = vector.load %arg1[%c0, %c0_0, %c0_1, %c0_2] : memref<1x4x4x16xf32, #tpu.memory_space<vmem>>, vector<1x4x4x16xf32>
    %1 = vector.shape_cast %0 : vector<1x4x4x16xf32> to vector<4x4x16xf32>
    %c0_3 = arith.constant 0 : index
    %c0_4 = arith.constant 0 : index
    %2 = vector.load %arg2[%c0_3, %c0_4] : memref<1x16xf32, #tpu.memory_space<vmem>>, vector<1x16xf32>
    %3 = vector.shape_cast %2 : vector<1x16xf32> to vector<16xf32>
    %4 = vector.shape_cast %3 : vector<16xf32> to vector<1x1x16xf32>
    %5 = vector.broadcast %4 : vector<1x1x16xf32> to vector<4x4x16xf32>
    %6 = arith.mulf %1, %5 : vector<4x4x16xf32>
    %c0_5 = arith.constant 0 : index
    %c0_6 = arith.constant 0 : index
    %7 = vector.load %arg3[%c0_5, %c0_6] : memref<1x16xf32, #tpu.memory_space<vmem>>, vector<1x16xf32>
    %8 = vector.shape_cast %7 : vector<1x16xf32> to vector<16xf32>
    %9 = vector.shape_cast %8 : vector<16xf32> to vector<1x1x16xf32>
    %10 = vector.broadcast %9 : vector<1x1x16xf32> to vector<4x4x16xf32>
    %11 = arith.addf %6, %10 : vector<4x4x16xf32>
    %cst = arith.constant 0.000000e+00 : f32
    %12 = vector.broadcast %cst : f32 to vector<6x6x16xf32>
    %c0_7 = arith.constant 0 : index
    %c0_8 = arith.constant 0 : index
    %c0_9 = arith.constant 0 : index
    %13 = vector.load %arg8[%c0_7, %c0_8, %c0_9] : memref<6x6x16xf32, #tpu.memory_space<vmem>>, vector<6x6x16xf32>
    tpu.vector_store %arg8[%c0_7, %c0_8, %c0_9], %12 {strides = array<i32>} : memref<6x6x16xf32, #tpu.memory_space<vmem>>, vector<6x6x16xf32>,
    %c1 = arith.constant 1 : index
    %c1_10 = arith.constant 1 : index
    %c0_11 = arith.constant 0 : index
    %14 = vector.load %arg8[%c1, %c1_10, %c0_11] : memref<6x6x16xf32, #tpu.memory_space<vmem>>, vector<4x4x16xf32>
    tpu.vector_store %arg8[%c1, %c1_10, %c0_11], %11 {strides = array<i32>} : memref<6x6x16xf32, #tpu.memory_space<vmem>>, vector<4x4x16xf32>,
    %c0_12 = arith.constant 0 : index
    %c0_13 = arith.constant 0 : index
    %c0_14 = arith.constant 0 : index
    %15 = vector.load %arg8[%c0_12, %c0_13, %c0_14] : memref<6x6x16xf32, #tpu.memory_space<vmem>>, vector<6x6x16xf32>
    %c0_15 = arith.constant 0 : index
    %c0_16 = arith.constant 0 : index
    %c0_17 = arith.constant 0 : index
    %16 = vector.load %arg4[%c0_15, %c0_16, %c0_17] : memref<3x3x16xf32, #tpu.memory_space<vmem>>, vector<1x1x16xf32>
    %17 = vector.shape_cast %16 : vector<1x1x16xf32> to vector<16xf32>
    %c0_18 = arith.constant 0 : index
    %c1_19 = arith.constant 1 : index
    %c0_20 = arith.constant 0 : index
    %18 = vector.load %arg4[%c0_18, %c1_19, %c0_20] : memref<3x3x16xf32, #tpu.memory_space<vmem>>, vector<1x1x16xf32>
    %19 = vector.shape_cast %18 : vector<1x1x16xf32> to vector<16xf32>
    %c0_21 = arith.constant 0 : index
    %c2 = arith.constant 2 : index
    %c0_22 = arith.constant 0 : index
    %20 = vector.load %arg4[%c0_21, %c2, %c0_22] : memref<3x3x16xf32, #tpu.memory_space<vmem>>, vector<1x1x16xf32>
    %21 = vector.shape_cast %20 : vector<1x1x16xf32> to vector<16xf32>
    %c1_23 = arith.constant 1 : index
    %c0_24 = arith.constant 0 : index
    %c0_25 = arith.constant 0 : index
    %22 = vector.load %arg4[%c1_23, %c0_24, %c0_25] : memref<3x3x16xf32, #tpu.memory_space<vmem>>, vector<1x1x16xf32>
    %23 = vector.shape_cast %22 : vector<1x1x16xf32> to vector<16xf32>
    %c1_26 = arith.constant 1 : index
    %c1_27 = arith.constant 1 : index
    %c0_28 = arith.constant 0 : index
    %24 = vector.load %arg4[%c1_26, %c1_27, %c0_28] : memref<3x3x16xf32, #tpu.memory_space<vmem>>, vector<1x1x16xf32>
    %25 = vector.shape_cast %24 : vector<1x1x16xf32> to vector<16xf32>
    %c1_29 = arith.constant 1 : index
    %c2_30 = arith.constant 2 : index
    %c0_31 = arith.constant 0 : index
    %26 = vector.load %arg4[%c1_29, %c2_30, %c0_31] : memref<3x3x16xf32, #tpu.memory_space<vmem>>, vector<1x1x16xf32>
    %27 = vector.shape_cast %26 : vector<1x1x16xf32> to vector<16xf32>
    %c2_32 = arith.constant 2 : index
    %c0_33 = arith.constant 0 : index
    %c0_34 = arith.constant 0 : index
    %28 = vector.load %arg4[%c2_32, %c0_33, %c0_34] : memref<3x3x16xf32, #tpu.memory_space<vmem>>, vector<1x1x16xf32>
    %29 = vector.shape_cast %28 : vector<1x1x16xf32> to vector<16xf32>
    %c2_35 = arith.constant 2 : index
    %c1_36 = arith.constant 1 : index
    %c0_37 = arith.constant 0 : index
    %30 = vector.load %arg4[%c2_35, %c1_36, %c0_37] : memref<3x3x16xf32, #tpu.memory_space<vmem>>, vector<1x1x16xf32>
    %31 = vector.shape_cast %30 : vector<1x1x16xf32> to vector<16xf32>
    %c2_38 = arith.constant 2 : index
    %c2_39 = arith.constant 2 : index
    %c0_40 = arith.constant 0 : index
    %32 = vector.load %arg4[%c2_38, %c2_39, %c0_40] : memref<3x3x16xf32, #tpu.memory_space<vmem>>, vector<1x1x16xf32>
    %33 = vector.shape_cast %32 : vector<1x1x16xf32> to vector<16xf32>
    %cst_41 = arith.constant 0.000000e+00 : f32
    %34 = vector.broadcast %cst_41 : f32 to vector<4x4x16xf32>
    %35 = vector.extract_strided_slice %15 {offsets = [0, 0, 0], sizes = [4, 4, 16], strides = [1, 1, 1]} : vector<6x6x16xf32> to vector<4x4x16xf32>
    %36 = vector.shape_cast %17 : vector<16xf32> to vector<1x1x16xf32>
    %37 = vector.broadcast %36 : vector<1x1x16xf32> to vector<4x4x16xf32>
    %38 = arith.mulf %35, %37 : vector<4x4x16xf32>
    %39 = arith.addf %34, %38 : vector<4x4x16xf32>
    %40 = vector.extract_strided_slice %15 {offsets = [0, 1, 0], sizes = [4, 4, 16], strides = [1, 1, 1]} : vector<6x6x16xf32> to vector<4x4x16xf32>
    %41 = vector.shape_cast %19 : vector<16xf32> to vector<1x1x16xf32>
    %42 = vector.broadcast %41 : vector<1x1x16xf32> to vector<4x4x16xf32>
    %43 = arith.mulf %40, %42 : vector<4x4x16xf32>
    %44 = arith.addf %39, %43 : vector<4x4x16xf32>
    %45 = vector.extract_strided_slice %15 {offsets = [0, 2, 0], sizes = [4, 4, 16], strides = [1, 1, 1]} : vector<6x6x16xf32> to vector<4x4x16xf32>
    %46 = vector.shape_cast %21 : vector<16xf32> to vector<1x1x16xf32>
    %47 = vector.broadcast %46 : vector<1x1x16xf32> to vector<4x4x16xf32>
    %48 = arith.mulf %45, %47 : vector<4x4x16xf32>
    %49 = arith.addf %44, %48 : vector<4x4x16xf32>
    %50 = vector.extract_strided_slice %15 {offsets = [1, 0, 0], sizes = [4, 4, 16], strides = [1, 1, 1]} : vector<6x6x16xf32> to vector<4x4x16xf32>
    %51 = vector.shape_cast %23 : vector<16xf32> to vector<1x1x16xf32>
    %52 = vector.broadcast %51 : vector<1x1x16xf32> to vector<4x4x16xf32>
    %53 = arith.mulf %50, %52 : vector<4x4x16xf32>
    %54 = arith.addf %49, %53 : vector<4x4x16xf32>
    %55 = vector.extract_strided_slice %15 {offsets = [1, 1, 0], sizes = [4, 4, 16], strides = [1, 1, 1]} : vector<6x6x16xf32> to vector<4x4x16xf32>
    %56 = vector.shape_cast %25 : vector<16xf32> to vector<1x1x16xf32>
    %57 = vector.broadcast %56 : vector<1x1x16xf32> to vector<4x4x16xf32>
    %58 = arith.mulf %55, %57 : vector<4x4x16xf32>
    %59 = arith.addf %54, %58 : vector<4x4x16xf32>
    %60 = vector.extract_strided_slice %15 {offsets = [1, 2, 0], sizes = [4, 4, 16], strides = [1, 1, 1]} : vector<6x6x16xf32> to vector<4x4x16xf32>
    %61 = vector.shape_cast %27 : vector<16xf32> to vector<1x1x16xf32>
    %62 = vector.broadcast %61 : vector<1x1x16xf32> to vector<4x4x16xf32>
    %63 = arith.mulf %60, %62 : vector<4x4x16xf32>
    %64 = arith.addf %59, %63 : vector<4x4x16xf32>
    %65 = vector.extract_strided_slice %15 {offsets = [2, 0, 0], sizes = [4, 4, 16], strides = [1, 1, 1]} : vector<6x6x16xf32> to vector<4x4x16xf32>
    %66 = vector.shape_cast %29 : vector<16xf32> to vector<1x1x16xf32>
    %67 = vector.broadcast %66 : vector<1x1x16xf32> to vector<4x4x16xf32>
    %68 = arith.mulf %65, %67 : vector<4x4x16xf32>
    %69 = arith.addf %64, %68 : vector<4x4x16xf32>
    %70 = vector.extract_strided_slice %15 {offsets = [2, 1, 0], sizes = [4, 4, 16], strides = [1, 1, 1]} : vector<6x6x16xf32> to vector<4x4x16xf32>
    %71 = vector.shape_cast %31 : vector<16xf32> to vector<1x1x16xf32>
    %72 = vector.broadcast %71 : vector<1x1x16xf32> to vector<4x4x16xf32>
    %73 = arith.mulf %70, %72 : vector<4x4x16xf32>
    %74 = arith.addf %69, %73 : vector<4x4x16xf32>
    %75 = vector.extract_strided_slice %15 {offsets = [2, 2, 0], sizes = [4, 4, 16], strides = [1, 1, 1]} : vector<6x6x16xf32> to vector<4x4x16xf32>
    %76 = vector.shape_cast %33 : vector<16xf32> to vector<1x1x16xf32>
    %77 = vector.broadcast %76 : vector<1x1x16xf32> to vector<4x4x16xf32>
    %78 = arith.mulf %75, %77 : vector<4x4x16xf32>
    %79 = arith.addf %74, %78 : vector<4x4x16xf32>
    %c0_42 = arith.constant 0 : index
    %c0_43 = arith.constant 0 : index
    %80 = vector.load %arg5[%c0_42, %c0_43] : memref<1x16xf32, #tpu.memory_space<vmem>>, vector<1x16xf32>
    %81 = vector.shape_cast %80 : vector<1x16xf32> to vector<16xf32>
    %82 = vector.shape_cast %81 : vector<16xf32> to vector<1x1x16xf32>
    %83 = vector.broadcast %82 : vector<1x1x16xf32> to vector<4x4x16xf32>
    %84 = arith.addf %79, %83 : vector<4x4x16xf32>
    %cst_44 = arith.constant 0.000000e+00 : f32
    %85 = vector.broadcast %cst_44 : f32 to vector<4x4x16xf32>
    %86 = arith.cmpf ogt, %84, %85 : vector<4x4x16xf32>
    %87 = math.exp %84 : vector<4x4x16xf32>
    %cst_45 = arith.constant 1.000000e+00 : f32
    %88 = vector.broadcast %cst_45 : f32 to vector<4x4x16xf32>
    %89 = arith.subf %87, %88 : vector<4x4x16xf32>
    %cst_46 = arith.constant 1.67326319 : f32
    %90 = vector.broadcast %cst_46 : f32 to vector<4x4x16xf32>
    %91 = arith.mulf %90, %89 : vector<4x4x16xf32>
    %92 = arith.select %86, %84, %91 : vector<4x4x16xi1>, vector<4x4x16xf32>
    %cst_47 = arith.constant 1.05070102 : f32
    %93 = vector.broadcast %cst_47 : f32 to vector<4x4x16xf32>
    %94 = arith.mulf %93, %92 : vector<4x4x16xf32>
    %c0_48 = arith.constant 0 : index
    %c0_49 = arith.constant 0 : index
    %c0_50 = arith.constant 0 : index
    %c0_51 = arith.constant 0 : index
    %95 = vector.load %arg6[%c0_48, %c0_49, %c0_50, %c0_51] : memref<1x4x4x16xf32, #tpu.memory_space<vmem>>, vector<1x4x4x16xf32>
    %96 = vector.shape_cast %95 : vector<1x4x4x16xf32> to vector<4x4x16xf32>
    %97 = vector.shape_cast %94 : vector<4x4x16xf32> to vector<1x4x4x16xf32>
    tpu.vector_store %arg6[%c0_48, %c0_49, %c0_50, %c0_51], %97 {strides = array<i32>} : memref<1x4x4x16xf32, #tpu.memory_space<vmem>>, vector<1x4x4x16xf32>,
    %cst_52 = arith.constant dense<0.000000e+00> : vector<4x16xf32>
    %98 = vector.multi_reduction <add>, %94, %cst_52 [0] : vector<4x4x16xf32> to vector<4x16xf32>
    %99 = arith.mulf %94, %94 : vector<4x4x16xf32>
    %cst_53 = arith.constant dense<0.000000e+00> : vector<4x16xf32>
    %100 = vector.multi_reduction <add>, %99, %cst_53 [0] : vector<4x4x16xf32> to vector<4x16xf32>
    %cst_54 = arith.constant dense<0.000000e+00> : vector<16xf32>
    %101 = vector.multi_reduction <add>, %98, %cst_54 [0] : vector<4x16xf32> to vector<16xf32>
    %102 = vector.shape_cast %101 : vector<16xf32> to vector<1x16xf32>
    %c0_55 = arith.constant 0 : index
    %c0_56 = arith.constant 0 : index
    %c0_57 = arith.constant 0 : index
    %103 = vector.load %arg7[%c0_55, %c0_56, %c0_57] : memref<1x2x16xf32, #tpu.memory_space<vmem>>, vector<1x1x16xf32>
    %104 = vector.shape_cast %103 : vector<1x1x16xf32> to vector<1x16xf32>
    %105 = vector.shape_cast %102 : vector<1x16xf32> to vector<1x1x16xf32>
    tpu.vector_store %arg7[%c0_55, %c0_56, %c0_57], %105 {strides = array<i32>} : memref<1x2x16xf32, #tpu.memory_space<vmem>>, vector<1x1x16xf32>,
    %cst_58 = arith.constant dense<0.000000e+00> : vector<16xf32>
    %106 = vector.multi_reduction <add>, %100, %cst_58 [0] : vector<4x16xf32> to vector<16xf32>
    %107 = vector.shape_cast %106 : vector<16xf32> to vector<1x16xf32>
    %c0_59 = arith.constant 0 : index
    %c1_60 = arith.constant 1 : index
    %c0_61 = arith.constant 0 : index
    %108 = vector.load %arg7[%c0_59, %c1_60, %c0_61] : memref<1x2x16xf32, #tpu.memory_space<vmem>>, vector<1x1x16xf32>
    %109 = vector.shape_cast %108 : vector<1x1x16xf32> to vector<1x16xf32>
    %110 = vector.shape_cast %107 : vector<1x16xf32> to vector<1x1x16xf32>
    tpu.vector_store %arg7[%c0_59, %c1_60, %c0_61], %110 {strides = array<i32>} : memref<1x2x16xf32, #tpu.memory_space<vmem>>, vector<1x1x16xf32>,
    return
  }
  func.func @transform_0(%arg0: i32) -> (i32, i32, i32, i32) {
    %c0_i32 = arith.constant 0 : i32
    %c0_i32_0 = arith.constant 0 : i32
    %c0_i32_1 = arith.constant 0 : i32
    %c0_i32_2 = arith.constant 0 : i32
    return %arg0, %c0_i32, %c0_i32_0, %c0_i32_1 : i32, i32, i32, i32
  }
  func.func @transform_1(%arg0: i32) -> (i32, i32) {
    %c0_i32 = arith.constant 0 : i32
    %c0_i32_0 = arith.constant 0 : i32
    %c0_i32_1 = arith.constant 0 : i32
    return %c0_i32, %c0_i32_0 : i32, i32
  }
  func.func @transform_2(%arg0: i32) -> (i32, i32) {
    %c0_i32 = arith.constant 0 : i32
    %c0_i32_0 = arith.constant 0 : i32
    %c0_i32_1 = arith.constant 0 : i32
    return %c0_i32, %c0_i32_0 : i32, i32
  }
  func.func @transform_3(%arg0: i32) -> (i32, i32, i32) {
    %c0_i32 = arith.constant 0 : i32
    %c0_i32_0 = arith.constant 0 : i32
    %c0_i32_1 = arith.constant 0 : i32
    %c0_i32_2 = arith.constant 0 : i32
    return %c0_i32, %c0_i32_0, %c0_i32_1 : i32, i32, i32
  }
  func.func @transform_4(%arg0: i32) -> (i32, i32) {
    %c0_i32 = arith.constant 0 : i32
    %c0_i32_0 = arith.constant 0 : i32
    %c0_i32_1 = arith.constant 0 : i32
    return %c0_i32, %c0_i32_0 : i32, i32
  }
  func.func @transform_5(%arg0: i32) -> (i32, i32, i32, i32) {
    %c0_i32 = arith.constant 0 : i32
    %c0_i32_0 = arith.constant 0 : i32
    %c0_i32_1 = arith.constant 0 : i32
    %c0_i32_2 = arith.constant 0 : i32
    return %arg0, %c0_i32, %c0_i32_0, %c0_i32_1 : i32, i32, i32, i32
  }
  func.func @transform_6(%arg0: i32) -> (i32, i32, i32) {
    %c0_i32 = arith.constant 0 : i32
    %c0_i32_0 = arith.constant 0 : i32
    %c0_i32_1 = arith.constant 0 : i32
    return %arg0, %c0_i32, %c0_i32_0 : i32, i32, i32
  }
}

module attributes {stable_mosaic.version = 11 : i64} {
  func.func @_patch_embed_kernel(%arg0: i32, %arg1: memref<32x128xbf16, #tpu.memory_space<vmem>>, %arg2: memref<128x16xbf16, #tpu.memory_space<vmem>>, %arg3: memref<1x16xf32, #tpu.memory_space<vmem>>, %arg4: memref<32x16xf32, #tpu.memory_space<vmem>>, %arg5: memref<1x2x16xf32, #tpu.memory_space<vmem>>) attributes {dimension_semantics = [#tpu.dimension_semantics<parallel>], iteration_bounds = array<i64: 1>, scalar_prefetch = 0 : i64, scratch_operands = 0 : i64, tpu.core_type = #tpu.core_type<tc>, window_params = [{transform_indices = @transform_0, window_bounds = array<i64: 32, 128>}, {pipeline_mode = #tpu.pipeline_mode<synchronous>, transform_indices = @transform_1, window_bounds = array<i64: 128, 16>}, {pipeline_mode = #tpu.pipeline_mode<synchronous>, transform_indices = @transform_2, window_bounds = array<i64: 1, 16>}, {transform_indices = @transform_3, window_bounds = array<i64: 32, 16>}, {transform_indices = @transform_4, window_bounds = array<i64: 1, 2, 16>}]} {
    %c0 = arith.constant 0 : index
    %c0_0 = arith.constant 0 : index
    %0 = vector.load %arg1[%c0, %c0_0] : memref<32x128xbf16, #tpu.memory_space<vmem>>, vector<32x128xbf16>
    %c0_1 = arith.constant 0 : index
    %c0_2 = arith.constant 0 : index
    %1 = vector.load %arg2[%c0_1, %c0_2] : memref<128x16xbf16, #tpu.memory_space<vmem>>, vector<128x16xbf16>
    %cst = arith.constant dense<0.000000e+00> : vector<32x16xf32>
    %2 = tpu.matmul %0, %1, %cst {dimension_numbers = #tpu.dot_dimension_numbers<[1], [0], [0], [1], [0, 0, 1, 1], [], []>} : vector<32x128xbf16>, vector<128x16xbf16>, vector<32x16xf32> -> vector<32x16xf32>
    %c0_3 = arith.constant 0 : index
    %c0_4 = arith.constant 0 : index
    %3 = vector.load %arg3[%c0_3, %c0_4] : memref<1x16xf32, #tpu.memory_space<vmem>>, vector<1x16xf32>
    %4 = vector.broadcast %3 : vector<1x16xf32> to vector<32x16xf32>
    %5 = arith.addf %2, %4 : vector<32x16xf32>
    %cst_5 = arith.constant 0.000000e+00 : f32
    %6 = vector.broadcast %cst_5 : f32 to vector<32x16xf32>
    %7 = arith.cmpf ogt, %5, %6 : vector<32x16xf32>
    %8 = math.exp %5 : vector<32x16xf32>
    %cst_6 = arith.constant 1.000000e+00 : f32
    %9 = vector.broadcast %cst_6 : f32 to vector<32x16xf32>
    %10 = arith.subf %8, %9 : vector<32x16xf32>
    %cst_7 = arith.constant 1.67326319 : f32
    %11 = vector.broadcast %cst_7 : f32 to vector<32x16xf32>
    %12 = arith.mulf %11, %10 : vector<32x16xf32>
    %13 = arith.select %7, %5, %12 : vector<32x16xi1>, vector<32x16xf32>
    %cst_8 = arith.constant 1.05070102 : f32
    %14 = vector.broadcast %cst_8 : f32 to vector<32x16xf32>
    %15 = arith.mulf %14, %13 : vector<32x16xf32>
    %c0_9 = arith.constant 0 : index
    %c0_10 = arith.constant 0 : index
    %16 = vector.load %arg4[%c0_9, %c0_10] : memref<32x16xf32, #tpu.memory_space<vmem>>, vector<32x16xf32>
    tpu.vector_store %arg4[%c0_9, %c0_10], %15 {strides = array<i32>} : memref<32x16xf32, #tpu.memory_space<vmem>>, vector<32x16xf32>,
    %cst_11 = arith.constant dense<0.000000e+00> : vector<16xf32>
    %17 = vector.multi_reduction <add>, %15, %cst_11 [0] : vector<32x16xf32> to vector<16xf32>
    %18 = vector.shape_cast %17 : vector<16xf32> to vector<1x16xf32>
    %c0_12 = arith.constant 0 : index
    %c0_13 = arith.constant 0 : index
    %c0_14 = arith.constant 0 : index
    %19 = vector.load %arg5[%c0_12, %c0_13, %c0_14] : memref<1x2x16xf32, #tpu.memory_space<vmem>>, vector<1x1x16xf32>
    %20 = vector.shape_cast %19 : vector<1x1x16xf32> to vector<1x16xf32>
    %21 = vector.shape_cast %18 : vector<1x16xf32> to vector<1x1x16xf32>
    tpu.vector_store %arg5[%c0_12, %c0_13, %c0_14], %21 {strides = array<i32>} : memref<1x2x16xf32, #tpu.memory_space<vmem>>, vector<1x1x16xf32>,
    %22 = arith.mulf %15, %15 : vector<32x16xf32>
    %cst_15 = arith.constant dense<0.000000e+00> : vector<16xf32>
    %23 = vector.multi_reduction <add>, %22, %cst_15 [0] : vector<32x16xf32> to vector<16xf32>
    %24 = vector.shape_cast %23 : vector<16xf32> to vector<1x16xf32>
    %c0_16 = arith.constant 0 : index
    %c1 = arith.constant 1 : index
    %c0_17 = arith.constant 0 : index
    %25 = vector.load %arg5[%c0_16, %c1, %c0_17] : memref<1x2x16xf32, #tpu.memory_space<vmem>>, vector<1x1x16xf32>
    %26 = vector.shape_cast %25 : vector<1x1x16xf32> to vector<1x16xf32>
    %27 = vector.shape_cast %24 : vector<1x16xf32> to vector<1x1x16xf32>
    tpu.vector_store %arg5[%c0_16, %c1, %c0_17], %27 {strides = array<i32>} : memref<1x2x16xf32, #tpu.memory_space<vmem>>, vector<1x1x16xf32>,
    return
  }
  func.func @transform_0(%arg0: i32) -> (i32, i32) {
    %c0_i32 = arith.constant 0 : i32
    %c0_i32_0 = arith.constant 0 : i32
    return %arg0, %c0_i32 : i32, i32
  }
  func.func @transform_1(%arg0: i32) -> (i32, i32) {
    %c0_i32 = arith.constant 0 : i32
    %c0_i32_0 = arith.constant 0 : i32
    %c0_i32_1 = arith.constant 0 : i32
    return %c0_i32, %c0_i32_0 : i32, i32
  }
  func.func @transform_2(%arg0: i32) -> (i32, i32) {
    %c0_i32 = arith.constant 0 : i32
    %c0_i32_0 = arith.constant 0 : i32
    %c0_i32_1 = arith.constant 0 : i32
    return %c0_i32, %c0_i32_0 : i32, i32
  }
  func.func @transform_3(%arg0: i32) -> (i32, i32) {
    %c0_i32 = arith.constant 0 : i32
    %c0_i32_0 = arith.constant 0 : i32
    return %arg0, %c0_i32 : i32, i32
  }
  func.func @transform_4(%arg0: i32) -> (i32, i32, i32) {
    %c0_i32 = arith.constant 0 : i32
    %c0_i32_0 = arith.constant 0 : i32
    %c0_i32_1 = arith.constant 0 : i32
    return %arg0, %c0_i32, %c0_i32_0 : i32, i32, i32
  }
}

module attributes {stable_mosaic.version = 11 : i64} {
  func.func @_pool_kernel(%arg0: i32, %arg1: memref<1x4x2x32xf32, #tpu.memory_space<vmem>>, %arg2: memref<1x16xf32, #tpu.memory_space<vmem>>, %arg3: memref<1x16xf32, #tpu.memory_space<vmem>>, %arg4: memref<1x4x2x32xf32, #tpu.memory_space<vmem>>, %arg5: memref<1x16xf32, #tpu.memory_space<vmem>>, %arg6: memref<1x16xf32, #tpu.memory_space<vmem>>, %arg7: memref<1x2x2x16xf32, #tpu.memory_space<vmem>>) attributes {dimension_semantics = [#tpu.dimension_semantics<parallel>], iteration_bounds = array<i64: 2>, scalar_prefetch = 0 : i64, scratch_operands = 0 : i64, tpu.core_type = #tpu.core_type<tc>, window_params = [{transform_indices = @transform_0, window_bounds = array<i64: 1, 4, 2, 32>}, {pipeline_mode = #tpu.pipeline_mode<synchronous>, transform_indices = @transform_1, window_bounds = array<i64: 1, 16>}, {pipeline_mode = #tpu.pipeline_mode<synchronous>, transform_indices = @transform_2, window_bounds = array<i64: 1, 16>}, {transform_indices = @transform_3, window_bounds = array<i64: 1, 4, 2, 32>}, {pipeline_mode = #tpu.pipeline_mode<synchronous>, transform_indices = @transform_4, window_bounds = array<i64: 1, 16>}, {pipeline_mode = #tpu.pipeline_mode<synchronous>, transform_indices = @transform_5, window_bounds = array<i64: 1, 16>}, {transform_indices = @transform_6, window_bounds = array<i64: 1, 2, 2, 16>}]} {
    %c0 = arith.constant 0 : index
    %c0_0 = arith.constant 0 : index
    %0 = vector.load %arg2[%c0, %c0_0] : memref<1x16xf32, #tpu.memory_space<vmem>>, vector<1x16xf32>
    %1 = vector.shape_cast %0 : vector<1x16xf32> to vector<16xf32>
    %c0_1 = arith.constant 0 : index
    %c0_2 = arith.constant 0 : index
    %2 = vector.load %arg3[%c0_1, %c0_2] : memref<1x16xf32, #tpu.memory_space<vmem>>, vector<1x16xf32>
    %3 = vector.shape_cast %2 : vector<1x16xf32> to vector<16xf32>
    %c0_3 = arith.constant 0 : index
    %c0_4 = arith.constant 0 : index
    %4 = vector.load %arg5[%c0_3, %c0_4] : memref<1x16xf32, #tpu.memory_space<vmem>>, vector<1x16xf32>
    %5 = vector.shape_cast %4 : vector<1x16xf32> to vector<16xf32>
    %c0_5 = arith.constant 0 : index
    %c0_6 = arith.constant 0 : index
    %6 = vector.load %arg6[%c0_5, %c0_6] : memref<1x16xf32, #tpu.memory_space<vmem>>, vector<1x16xf32>
    %7 = vector.shape_cast %6 : vector<1x16xf32> to vector<16xf32>
    %c0_7 = arith.constant 0 : index
    %c0_8 = arith.constant 0 : index
    %c0_9 = arith.constant 0 : index
    %c0_10 = arith.constant 0 : index
    %8 = vector.load %arg1[%c0_7, %c0_8, %c0_9, %c0_10] : memref<1x4x2x32xf32, #tpu.memory_space<vmem>>, vector<1x4x2x16xf32>
    %9 = vector.shape_cast %8 : vector<1x4x2x16xf32> to vector<4x2x16xf32>
    %10 = vector.shape_cast %1 : vector<16xf32> to vector<1x1x16xf32>
    %11 = vector.broadcast %10 : vector<1x1x16xf32> to vector<4x2x16xf32>
    %12 = arith.mulf %9, %11 : vector<4x2x16xf32>
    %13 = vector.shape_cast %3 : vector<16xf32> to vector<1x1x16xf32>
    %14 = vector.broadcast %13 : vector<1x1x16xf32> to vector<4x2x16xf32>
    %15 = arith.addf %12, %14 : vector<4x2x16xf32>
    %c0_11 = arith.constant 0 : index
    %c0_12 = arith.constant 0 : index
    %c0_13 = arith.constant 0 : index
    %c0_14 = arith.constant 0 : index
    %16 = vector.load %arg4[%c0_11, %c0_12, %c0_13, %c0_14] : memref<1x4x2x32xf32, #tpu.memory_space<vmem>>, vector<1x4x2x16xf32>
    %17 = vector.shape_cast %16 : vector<1x4x2x16xf32> to vector<4x2x16xf32>
    %18 = vector.shape_cast %5 : vector<16xf32> to vector<1x1x16xf32>
    %19 = vector.broadcast %18 : vector<1x1x16xf32> to vector<4x2x16xf32>
    %20 = arith.mulf %17, %19 : vector<4x2x16xf32>
    %21 = arith.addf %15, %20 : vector<4x2x16xf32>
    %22 = vector.shape_cast %7 : vector<16xf32> to vector<1x1x16xf32>
    %23 = vector.broadcast %22 : vector<1x1x16xf32> to vector<4x2x16xf32>
    %24 = arith.addf %21, %23 : vector<4x2x16xf32>
    %c0_15 = arith.constant 0 : index
    %c0_16 = arith.constant 0 : index
    %c0_17 = arith.constant 0 : index
    %c16 = arith.constant 16 : index
    %25 = vector.load %arg1[%c0_15, %c0_16, %c0_17, %c16] : memref<1x4x2x32xf32, #tpu.memory_space<vmem>>, vector<1x4x2x16xf32>
    %26 = vector.shape_cast %25 : vector<1x4x2x16xf32> to vector<4x2x16xf32>
    %27 = vector.shape_cast %1 : vector<16xf32> to vector<1x1x16xf32>
    %28 = vector.broadcast %27 : vector<1x1x16xf32> to vector<4x2x16xf32>
    %29 = arith.mulf %26, %28 : vector<4x2x16xf32>
    %30 = vector.shape_cast %3 : vector<16xf32> to vector<1x1x16xf32>
    %31 = vector.broadcast %30 : vector<1x1x16xf32> to vector<4x2x16xf32>
    %32 = arith.addf %29, %31 : vector<4x2x16xf32>
    %c0_18 = arith.constant 0 : index
    %c0_19 = arith.constant 0 : index
    %c0_20 = arith.constant 0 : index
    %c16_21 = arith.constant 16 : index
    %33 = vector.load %arg4[%c0_18, %c0_19, %c0_20, %c16_21] : memref<1x4x2x32xf32, #tpu.memory_space<vmem>>, vector<1x4x2x16xf32>
    %34 = vector.shape_cast %33 : vector<1x4x2x16xf32> to vector<4x2x16xf32>
    %35 = vector.shape_cast %5 : vector<16xf32> to vector<1x1x16xf32>
    %36 = vector.broadcast %35 : vector<1x1x16xf32> to vector<4x2x16xf32>
    %37 = arith.mulf %34, %36 : vector<4x2x16xf32>
    %38 = arith.addf %32, %37 : vector<4x2x16xf32>
    %39 = vector.shape_cast %7 : vector<16xf32> to vector<1x1x16xf32>
    %40 = vector.broadcast %39 : vector<1x1x16xf32> to vector<4x2x16xf32>
    %41 = arith.addf %38, %40 : vector<4x2x16xf32>
    %42 = arith.maximumf %24, %41 : vector<4x2x16xf32>
    %43 = vector.shape_cast %42 : vector<4x2x16xf32> to vector<2x2x2x16xf32>
    %44 = vector.extract_strided_slice %43 {offsets = [0, 0, 0, 0], sizes = [2, 1, 2, 16], strides = [1, 1, 1, 1]} : vector<2x2x2x16xf32> to vector<2x1x2x16xf32>
    %45 = vector.shape_cast %44 : vector<2x1x2x16xf32> to vector<2x2x16xf32>
    %46 = vector.extract_strided_slice %43 {offsets = [0, 1, 0, 0], sizes = [2, 1, 2, 16], strides = [1, 1, 1, 1]} : vector<2x2x2x16xf32> to vector<2x1x2x16xf32>
    %47 = vector.shape_cast %46 : vector<2x1x2x16xf32> to vector<2x2x16xf32>
    %48 = arith.maximumf %45, %47 : vector<2x2x16xf32>
    %c0_22 = arith.constant 0 : index
    %c0_23 = arith.constant 0 : index
    %c0_24 = arith.constant 0 : index
    %c0_25 = arith.constant 0 : index
    %49 = vector.load %arg7[%c0_22, %c0_23, %c0_24, %c0_25] : memref<1x2x2x16xf32, #tpu.memory_space<vmem>>, vector<1x2x2x16xf32>
    %50 = vector.shape_cast %49 : vector<1x2x2x16xf32> to vector<2x2x16xf32>
    %51 = vector.shape_cast %48 : vector<2x2x16xf32> to vector<1x2x2x16xf32>
    tpu.vector_store %arg7[%c0_22, %c0_23, %c0_24, %c0_25], %51 {strides = array<i32>} : memref<1x2x2x16xf32, #tpu.memory_space<vmem>>, vector<1x2x2x16xf32>,
    return
  }
  func.func @transform_0(%arg0: i32) -> (i32, i32, i32, i32) {
    %c0_i32 = arith.constant 0 : i32
    %c0_i32_0 = arith.constant 0 : i32
    %c0_i32_1 = arith.constant 0 : i32
    %c0_i32_2 = arith.constant 0 : i32
    return %arg0, %c0_i32, %c0_i32_0, %c0_i32_1 : i32, i32, i32, i32
  }
  func.func @transform_1(%arg0: i32) -> (i32, i32) {
    %c0_i32 = arith.constant 0 : i32
    %c0_i32_0 = arith.constant 0 : i32
    %c0_i32_1 = arith.constant 0 : i32
    return %c0_i32, %c0_i32_0 : i32, i32
  }
  func.func @transform_2(%arg0: i32) -> (i32, i32) {
    %c0_i32 = arith.constant 0 : i32
    %c0_i32_0 = arith.constant 0 : i32
    %c0_i32_1 = arith.constant 0 : i32
    return %c0_i32, %c0_i32_0 : i32, i32
  }
  func.func @transform_3(%arg0: i32) -> (i32, i32, i32, i32) {
    %c0_i32 = arith.constant 0 : i32
    %c0_i32_0 = arith.constant 0 : i32
    %c0_i32_1 = arith.constant 0 : i32
    %c0_i32_2 = arith.constant 0 : i32
    return %arg0, %c0_i32, %c0_i32_0, %c0_i32_1 : i32, i32, i32, i32
  }
  func.func @transform_4(%arg0: i32) -> (i32, i32) {
    %c0_i32 = arith.constant 0 : i32
    %c0_i32_0 = arith.constant 0 : i32
    %c0_i32_1 = arith.constant 0 : i32
    return %c0_i32, %c0_i32_0 : i32, i32
  }
  func.func @transform_5(%arg0: i32) -> (i32, i32) {
    %c0_i32 = arith.constant 0 : i32
    %c0_i32_0 = arith.constant 0 : i32
    %c0_i32_1 = arith.constant 0 : i32
    return %c0_i32, %c0_i32_0 : i32, i32
  }
  func.func @transform_6(%arg0: i32) -> (i32, i32, i32, i32) {
    %c0_i32 = arith.constant 0 : i32
    %c0_i32_0 = arith.constant 0 : i32
    %c0_i32_1 = arith.constant 0 : i32
    %c0_i32_2 = arith.constant 0 : i32
    return %arg0, %c0_i32, %c0_i32_0, %c0_i32_1 : i32, i32, i32, i32
  }
}

</mosaic_0001>

<llo_original>
// kernel: convmixer_maxpool_forward.6
$region0: #{convmixer_maxpool_forward.6}
  #allocation0 [shape = 'u32[]', space=smem, size = 0x4, offset = 0x4, fixed_abs, tag = 'smem constant byte address 0x4 - core index']
  #allocation1 [shape = 'u32[144,128]{1,0:T(1,128)}', space=vmem, size = 0x12000, scoped, tag = 'internal scratch']
  %s0 = inlined_call_operand.vmem [shape: bf16[32,128], index: 0, kind: input, shape index: {}]
  %s1 = inlined_call_operand.vmem [shape: bf16[128,16], index: 1, kind: input, shape index: {}]
  %s2 = inlined_call_operand.vmem [shape: f32[1,16], index: 2, kind: input, shape index: {}]
  %s3 = inlined_call_operand.vmem [shape: f32[32,16], index: 3, kind: output, shape index: {0}]
  %s4 = inlined_call_operand.vmem [shape: f32[1,2,16], index: 4, kind: output, shape index: {1}]
  %5 = xla_tuple %s3, %s4
  %s6 = sld [smem:[#allocation0]]
  $region30: #{convmixer_maxpool_forward.6} parent=0
    _
  %s8 = ssub.s32 1, %s6
  %s9 = scalar_select 0, %s8, %s6
  // Predicated region
  $region2: #{convmixer_maxpool_forward.6} parent=0 // pred_check
    _
  $region3: #{convmixer_maxpool_forward.6} parent=0 // pred_check_branch
    %11 = sbr.rel (0) target = $region5
  $region4: #{convmixer_maxpool_forward.6} parent=0 // pred_region
    _
  $region5: #{convmixer_maxpool_forward.6} parent=0 // pred_fallthru
    _
  // Predicated region
  $region6: #{convmixer_maxpool_forward.6} parent=0 // pred_check
    _
  $region7: #{convmixer_maxpool_forward.6} parent=0 // pred_check_branch
    %13 = sbr.rel (0) target = $region9
  $region8: #{convmixer_maxpool_forward.6} parent=0 // pred_region
    _
  $region9: #{convmixer_maxpool_forward.6} parent=0 // pred_fallthru
    _
  // Predicated region
  $region10: #{convmixer_maxpool_forward.6} parent=0 // pred_check
    _
  $region11: #{convmixer_maxpool_forward.6} parent=0 // pred_check_branch
    %15 = sbr.rel (0) target = $region13
  $region12: #{convmixer_maxpool_forward.6} parent=0 // pred_region
    _
  $region13: #{convmixer_maxpool_forward.6} parent=0 // pred_fallthru
    _
  %v17 = vld [vmem:[%s0] sm:$0xf]
  %v18 = vld [vmem:[%s0 + $0x4] sm:$0xf]
  %v19 = vld [vmem:[%s0 + $0x8] sm:$0xf]
  %v20 = vld [vmem:[%s0 + $0xc] sm:$0xf]
  %v21 = vld [vmem:[%s1] sm:$0xf]
  %v22 = vld [vmem:[%s1 + $0x4] sm:$0xf]
  %v23 = vld [vmem:[%s1 + $0x8] sm:$0xf]
  %v24 = vld [vmem:[%s1 + $0xc] sm:$0xf]
  %v25 = vld [vmem:[%s1 + $0x10] sm:$0xf]
  %v26 = vld [vmem:[%s1 + $0x14] sm:$0xf]
  %v27 = vld [vmem:[%s1 + $0x18] sm:$0xf]
  %v28 = vld [vmem:[%s1 + $0x1c] sm:$0xf]
  %v29 = vld [vmem:[%s1 + $0x20] sm:$0xf]
  %v30 = vld [vmem:[%s1 + $0x24] sm:$0xf]
  %v31 = vld [vmem:[%s1 + $0x28] sm:$0xf]
  %v32 = vld [vmem:[%s1 + $0x2c] sm:$0xf]
  %v33 = vld [vmem:[%s1 + $0x30] sm:$0xf]
  %v34 = vld [vmem:[%s1 + $0x34] sm:$0xf]
  %v35 = vld [vmem:[%s1 + $0x38] sm:$0xf]
  %v36 = vld [vmem:[%s1 + $0x3c] sm:$0xf]
  %v37 = vld [vmem:[%s2] sm:$0x1]
  %v39 = vlaneseq
  %v40 = vshrl.u32 %v39, 7
  %v41 = vsub.s32 0, %v40
  %v42 = vrot.slane %v37, %v41
  %v48 = vunpack.c.l.b16 %v17
  %v49 = vunpack.c.l.b16 %v18
  %v50 = vunpack.c.l.b16 %v19
  %v51 = vunpack.c.l.b16 %v20
  %v52 = vpack.c.b16 %v49, %v48
  %v53 = vpack.c.b16 %v51, %v50
  %v72 = vunpack.c.l.b16 %v21
  %v73 = vunpack.c.l.b16 %v22
  %v74 = vunpack.c.l.b16 %v23
  %v75 = vunpack.c.l.b16 %v24
  %v76 = vunpack.c.l.b16 %v25
  %v77 = vunpack.c.l.b16 %v26
  %v78 = vunpack.c.l.b16 %v27
  %v79 = vunpack.c.l.b16 %v28
  %v80 = vunpack.c.l.b16 %v29
  %v81 = vunpack.c.l.b16 %v30
  %v82 = vunpack.c.l.b16 %v31
  %v83 = vunpack.c.l.b16 %v32
  %v84 = vunpack.c.l.b16 %v33
  %v85 = vunpack.c.l.b16 %v34
  %v86 = vunpack.c.l.b16 %v35
  %v87 = vunpack.c.l.b16 %v36
  %v88 = vpack.c.b16 %v73, %v72
  %v89 = vpack.c.b16 %v75, %v74
  %v90 = vpack.c.b16 %v77, %v76
  %v91 = vpack.c.b16 %v79, %v78
  %v92 = vpack.c.b16 %v81, %v80
  %v93 = vpack.c.b16 %v83, %v82
  %v94 = vpack.c.b16 %v85, %v84
  %v95 = vpack.c.b16 %v87, %v86
  %104 = vmatprep.subr.bf16.mxu0 0
  %105 = vmatpush1.bf16.msra.mxu0 %v95
  %106 = vmatprep.subr.bf16.mxu0 0
  %107 = vmatpush1.bf16.msra.mxu0 %v94
  %108 = vmatprep.subr.bf16.mxu0 0
  %109 = vmatpush1.bf16.msra.mxu0 %v93
  %110 = vmatprep.subr.bf16.mxu0 0
  %111 = vmatpush1.bf16.msra.mxu0 %v92
  %112 = vmatprep.subr.bf16.mxu0 0
  %113 = vmatpush1.bf16.msra.mxu0 %v91
  %114 = vmatprep.subr.bf16.mxu0 0
  %115 = vmatpush1.bf16.msra.mxu0 %v90
  %116 = vmatprep.subr.bf16.mxu0 0
  %117 = vmatpush1.bf16.msra.mxu0 %v89
  %118 = vmatprep.subr.bf16.mxu0 0
  %119 = vmatpush1.bf16.msra.mxu0 %v88
  %120 = vmatprep.subr.bf16.mxu0 0
  %121 = vmatpush2.bf16.msra.mxu0 0
  %122 = vmatprep.subr.bf16.mxu0 0
  %123 = vmatpush2.bf16.msra.mxu0 0
  %124 = vmatprep.subr.bf16.mxu0 0
  %125 = vmatpush2.bf16.msra.mxu0 0
  %126 = vmatprep.subr.bf16.mxu0 0
  %127 = vmatpush2.bf16.msra.mxu0 0
  %128 = vmatprep.subr.bf16.mxu0 0
  %129 = vmatpush2.bf16.msra.mxu0 0
  %130 = vmatprep.subr.bf16.mxu0 0
  %131 = vmatpush2.bf16.msra.mxu0 0
  %132 = vmatprep.subr.bf16.mxu0 0
  %133 = vmatpush2.bf16.msra.mxu0 0
  %134 = vmatprep.subr.bf16.mxu0 0
  %135 = vmatpush2.bf16.msra.mxu0 0
  %136 = vmatprep.mubr.bf16.mxu0 0
  %137 = vmatmul.mubr.bf16.gmra.mxu0 %v52
  %v138 = vpop.f32.mrf.mxu0
  %v139 = vadd.f32 %v42, %v138
  %v140 = vpop.f32.mrf.mxu0
  %v141 = vpop.f32.mrf.mxu0
  %v142 = vadd.f32 %v42, %v141
  %v143 = vpop.f32.mrf.mxu0
  %144 = vmatprep.mubr.bf16.mxu0 0
  %145 = vmatmul.mubr.bf16.gmra.mxu0 %v53
  %v146 = vpop.f32.mrf.mxu0
  %v147 = vadd.f32 %v42, %v146
  %v148 = vpop.f32.mrf.mxu0
  %v149 = vpop.f32.mrf.mxu0
  %v150 = vadd.f32 %v42, %v149
  %v151 = vpop.f32.mrf.mxu0
  %152 = vdwg.mxu0
  %vm153 = vcmp.gt.f32.partialorder %v139, 0.0
  %vm154 = vcmp.gt.f32.partialorder %v142, 0.0
  %vm155 = vcmp.gt.f32.partialorder %v147, 0.0
  %vm156 = vcmp.gt.f32.partialorder %v150, 0.0
  %v157 = vmul.f32 %v139, 1.442695
  %v158 = vpow.pop %v157
  %v159 = vmul.f32 %v142, 1.442695
  %v160 = vpow.pop %v159
  %v161 = vmul.f32 %v147, 1.442695
  %v162 = vpow.pop %v161
  %v163 = vmul.f32 %v150, 1.442695
  %v164 = vpow.pop %v163
  %v165 = vsub.f32 %v158, 1.0
  %v166 = vsub.f32 %v160, 1.0
  %v167 = vsub.f32 %v162, 1.0
  %v168 = vsub.f32 %v164, 1.0
  %v169 = vmul.f32 %v165, 1.6732632
  %v170 = vmul.f32 %v166, 1.6732632
  %v171 = vmul.f32 %v167, 1.6732632
  %v172 = vmul.f32 %v168, 1.6732632
  %v173 = vsel %vm153, %v139, %v169
  %v174 = vsel %vm154, %v142, %v170
  %v175 = vsel %vm155, %v147, %v171
  %v176 = vsel %vm156, %v150, %v172
  %v177 = vmul.f32 %v173, 1.050701
  %v178 = vmul.f32 %v174, 1.050701
  %v179 = vmul.f32 %v175, 1.050701
  %v180 = vmul.f32 %v176, 1.050701
  %vm181 = vcmask 130048
  %182 = vst.msk [vmem:[%s3] sm:$0xff] %vm181, %v177
  %183 = vst.msk [vmem:[%s3 + $0x8] sm:$0xff] %vm181, %v178
  %184 = vst.msk [vmem:[%s3 + $0x10] sm:$0xff] %vm181, %v179
  %185 = vst.msk [vmem:[%s3 + $0x18] sm:$0xff] %vm181, %v180
  %v186 = vsel %vm181, %v177, 0.0
  %v187 = vsel %vm181, %v178, 0.0
  %v188 = vadd.f32 %v186, %v187
  %v189 = vsel %vm181, %v179, 0.0
  %v190 = vadd.f32 %v188, %v189
  %v191 = vsel %vm181, %v180, 0.0
  %v192 = vadd.f32 %v190, %v191
  %v193 = vrot.slane %v192, 4
  %v194 = vadd.f32 %v192, %v193
  %v195 = vrot.slane %v194, 2
  %v196 = vadd.f32 %v194, %v195
  %v197 = vrot.slane %v196, 1
  %v198 = vadd.f32 %v196, %v197
  %vm199 = vcmask 122880
  %200 = vst.msk [vmem:[%s4] sm:$0x1] %vm199, %v198
  %v201 = vmul.f32 %v177, %v177
  %v202 = vmul.f32 %v178, %v178
  %v203 = vmul.f32 %v179, %v179
  %v204 = vmul.f32 %v180, %v180
  %v205 = vsel %vm181, %v201, 0.0
  %v206 = vsel %vm181, %v202, 0.0
  %v207 = vadd.f32 %v205, %v206
  %v208 = vsel %vm181, %v203, 0.0
  %v209 = vadd.f32 %v207, %v208
  %v210 = vsel %vm181, %v204, 0.0
  %v211 = vadd.f32 %v209, %v210
  %v212 = vrot.slane %v211, 4
  %v213 = vadd.f32 %v211, %v212
  %v214 = vrot.slane %v213, 2
  %v215 = vadd.f32 %v213, %v214
  %v216 = vrot.slane %v215, 1
  %v217 = vadd.f32 %v215, %v216
  %218 = vst.msk [vmem:[%s4 + $0x1] sm:$0x1] %vm199, %v217
  // Predicated region
  $region14: #{convmixer_maxpool_forward.6} parent=0 // pred_check
    _
  $region15: #{convmixer_maxpool_forward.6} parent=0 // pred_check_branch
    %220 = sbr.rel (0) target = $region17
  $region16: #{convmixer_maxpool_forward.6} parent=0 // pred_region
    _
  $region17: #{convmixer_maxpool_forward.6} parent=0 // pred_fallthru
    _
  // Predicated region
  $region18: #{convmixer_maxpool_forward.6} parent=0 // pred_check
    _
  $region19: #{convmixer_maxpool_forward.6} parent=0 // pred_check_branch
    %222 = sbr.rel (0) target = $region21
  $region20: #{convmixer_maxpool_forward.6} parent=0 // pred_region
    _
  $region21: #{convmixer_maxpool_forward.6} parent=0 // pred_fallthru
    _
  // Predicated region
  $region22: #{convmixer_maxpool_forward.6} parent=0 // pred_check
    _
  $region23: #{convmixer_maxpool_forward.6} parent=0 // pred_check_branch
    %224 = sbr.rel (0) target = $region25
  $region24: #{convmixer_maxpool_forward.6} parent=0 // pred_region
    _
  $region25: #{convmixer_maxpool_forward.6} parent=0 // pred_fallthru
    _
  // Predicated region
  $region26: #{convmixer_maxpool_forward.6} parent=0 // pred_check
    _
  $region27: #{convmixer_maxpool_forward.6} parent=0 // pred_check_branch
    %226 = sbr.rel (0) target = $region29
  $region28: #{convmixer_maxpool_forward.6} parent=0 // pred_region
    _
  $region29: #{convmixer_maxpool_forward.6} parent=0 // pred_fallthru
    _

// kernel: convmixer_maxpool_forward.7
$region0: #{convmixer_maxpool_forward.7}
  #allocation0 [shape = 'u32[]', space=smem, size = 0x4, offset = 0x4, fixed_abs, tag = 'smem constant byte address 0x4 - core index']
  #allocation1 [shape = 'u32[144,128]{1,0:T(1,128)}', space=vmem, size = 0x12000, scoped, tag = 'internal scratch']
  #allocation2 [shape = 'f32[6,6,16]{2,1,0:T(8,128)}', space=vmem, size = 0x6000, scoped, tag = 'scratch operand']
  %s0 = inlined_call_operand.vmem [shape: f32[2,4,4,16], index: 0, kind: input, shape index: {}]
  %s1 = inlined_call_operand.vmem [shape: f32[1,16], index: 1, kind: input, shape index: {}]
  %s2 = inlined_call_operand.vmem [shape: f32[1,16], index: 2, kind: input, shape index: {}]
  %s3 = inlined_call_operand.vmem [shape: f32[3,3,16], index: 3, kind: input, shape index: {}]
  %s4 = inlined_call_operand.vmem [shape: f32[1,16], index: 4, kind: input, shape index: {}]
  %s5 = inlined_call_operand.vmem [shape: f32[2,4,4,16], index: 5, kind: output, shape index: {0}]
  %s6 = inlined_call_operand.vmem [shape: f32[2,2,16], index: 6, kind: output, shape index: {1}]
  %7 = xla_tuple %s5, %s6
  %s8 = sld [smem:[#allocation0]]
  $region61: #{convmixer_maxpool_forward.7} parent=0
    _
  %s10 = ssub.s32 1, %s8
  %s11 = scalar_select 0, %s10, %s8
  loop: start=0, step=1, limit=4
  $region2: #{convmixer_maxpool_forward.7} parent=0 // loop_pre_header
    _
  $region3: #{convmixer_maxpool_forward.7} parent=0 // loop_header
    %s13 = sphi 0, %s17
    %p14 = scmp.ge.s32.totalorder %s13, 4
    %s23 = sphi 0, %s25
    %s26 = sphi 0, %s23
    %s27 = sphi 0, %s26
    %s43 = sphi 0, %s27
    %s47 = sphi 0, %s47
    %s49 = sphi 0, %s47
    %s50 = sphi 0, %s49
    %s64 = sphi 0, %s50
    %s68 = sphi 0, %s68
    %s70 = sphi 0, %s68
    %s71 = sphi 0, %s70
    %s85 = sphi 0, %s71
    %s89 = sphi 0, %s89
    %s91 = sphi 0, %s89
    %s92 = sphi 0, %s91
    %s106 = sphi 0, %s92
    %s110 = sphi 0, %s110
    %s112 = sphi 0, %s110
    %s113 = sphi 0, %s112
    %s127 = sphi 0, %s113
    %s133 = sphi 0, %s135
    %s136 = sphi 0, %s133
    %s137 = sphi 0, %s136
    %s153 = sphi 0, %s137
    %s159 = sphi 0, %s161
    %s162 = sphi 0, %s159
    %s163 = sphi 0, %s162
    %s179 = sphi 0, %s163
  $region4: #{convmixer_maxpool_forward.7} parent=0 // loop_header_branch
    %16 = sbr.rel (%p14) target = $region8
  $region5: #{convmixer_maxpool_forward.7} parent=0 // loop_body
    %s18 = ssub.s32 %s13, 1
    %s19 = ssub.s32 %s13, 2
    %s20 = sadd.s32 %s13, 1
    %s21 = ssub.s32 %s13, %s20
    %p22 = scmp.eq.s32.totalorder %s21, 0
    %s24 = sadd.s32 %s23, 1
    %s25 = scalar_select %p22, %s23, %s24
    %p28 = pneg %p22
    %p29 = scmp.eq.s32.totalorder %s13, 1
    %p30 = por %p28, %p29
    %p31 = scmp.ne.s32.totalorder %s23, %s26
    %p32 = scmp.eq.s32.totalorder %s13, 0
    %p33 = por %p31, %p32
    %p34 = scmp.ne.s32.totalorder %s23, %s26
    %p35 = scmp.eq.s32.totalorder %s18, 1
    %p36 = por %p34, %p35
    %p37 = scmp.ne.s32.totalorder %s26, %s27
    %p38 = scmp.eq.s32.totalorder %s18, 0
    %p39 = por %p37, %p38
    %p40 = scmp.ne.s32.totalorder %s26, %s27
    %p41 = scmp.eq.s32.totalorder %s19, 1
    %p42 = por %p40, %p41
    %p44 = scmp.ne.s32.totalorder %s27, %s43
    %p45 = scmp.eq.s32.totalorder %s19, 0
    %p46 = por %p44, %p45
    %s48 = sadd.s32 %s47, 1
    %p51 = scmp.eq.s32.totalorder %s13, 1
    %p52 = scmp.ne.s32.totalorder %s47, %s49
    %p53 = scmp.eq.s32.totalorder %s13, 0
    %p54 = por %p52, %p53
    %p55 = scmp.ne.s32.totalorder %s47, %s49
    %p56 = scmp.eq.s32.totalorder %s18, 1
    %p57 = por %p55, %p56
    %p58 = scmp.ne.s32.totalorder %s49, %s50
    %p59 = scmp.eq.s32.totalorder %s18, 0
    %p60 = por %p58, %p59
    %p61 = scmp.ne.s32.totalorder %s49, %s50
    %p62 = scmp.eq.s32.totalorder %s19, 1
    %p63 = por %p61, %p62
    %p65 = scmp.ne.s32.totalorder %s50, %s64
    %p66 = scmp.eq.s32.totalorder %s19, 0
    %p67 = por %p65, %p66
    %s69 = sadd.s32 %s68, 1
    %p72 = scmp.eq.s32.totalorder %s13, 1
    %p73 = scmp.ne.s32.totalorder %s68, %s70
    %p74 = scmp.eq.s32.totalorder %s13, 0
    %p75 = por %p73, %p74
    %p76 = scmp.ne.s32.totalorder %s68, %s70
    %p77 = scmp.eq.s32.totalorder %s18, 1
    %p78 = por %p76, %p77
    %p79 = scmp.ne.s32.totalorder %s70, %s71
    %p80 = scmp.eq.s32.totalorder %s18, 0
    %p81 = por %p79, %p80
    %p82 = scmp.ne.s32.totalorder %s70, %s71
    %p83 = scmp.eq.s32.totalorder %s19, 1
    %p84 = por %p82, %p83
    %p86 = scmp.ne.s32.totalorder %s71, %s85
    %p87 = scmp.eq.s32.totalorder %s19, 0
    %p88 = por %p86, %p87
    %s90 = sadd.s32 %s89, 1
    %p93 = scmp.eq.s32.totalorder %s13, 1
    %p94 = scmp.ne.s32.totalorder %s89, %s91
    %p95 = scmp.eq.s32.totalorder %s13, 0
    %p96 = por %p94, %p95
    %p97 = scmp.ne.s32.totalorder %s89, %s91
    %p98 = scmp.eq.s32.totalorder %s18, 1
    %p99 = por %p97, %p98
    %p100 = scmp.ne.s32.totalorder %s91, %s92
    %p101 = scmp.eq.s32.totalorder %s18, 0
    %p102 = por %p100, %p101
    %p103 = scmp.ne.s32.totalorder %s91, %s92
    %p104 = scmp.eq.s32.totalorder %s19, 1
    %p105 = por %p103, %p104
    %p107 = scmp.ne.s32.totalorder %s92, %s106
    %p108 = scmp.eq.s32.totalorder %s19, 0
    %p109 = por %p107, %p108
    %s111 = sadd.s32 %s110, 1
    %p114 = scmp.eq.s32.totalorder %s13, 1
    %p115 = scmp.ne.s32.totalorder %s110, %s112
    %p116 = scmp.eq.s32.totalorder %s13, 0
    %p117 = por %p115, %p116
    %p118 = scmp.ne.s32.totalorder %s110, %s112
    %p119 = scmp.eq.s32.totalorder %s18, 1
    %p120 = por %p118, %p119
    %p121 = scmp.ne.s32.totalorder %s112, %s113
    %p122 = scmp.eq.s32.totalorder %s18, 0
    %p123 = por %p121, %p122
    %p124 = scmp.ne.s32.totalorder %s112, %s113
    %p125 = scmp.eq.s32.totalorder %s19, 1
    %p126 = por %p124, %p125
    %p128 = scmp.ne.s32.totalorder %s113, %s127
    %p129 = scmp.eq.s32.totalorder %s19, 0
    %p130 = por %p128, %p129
    %s131 = ssub.s32 %s13, %s20
    %p132 = scmp.eq.s32.totalorder %s131, 0
    %s134 = sadd.s32 %s133, 1
    %s135 = scalar_select %p132, %s133, %s134
    %p138 = pneg %p132
    %p139 = scmp.eq.s32.totalorder %s13, 1
    %p140 = por %p138, %p139
    %p141 = scmp.ne.s32.totalorder %s133, %s136
    %p142 = scmp.eq.s32.totalorder %s13, 0
    %p143 = por %p141, %p142
    %p144 = scmp.ne.s32.totalorder %s133, %s136
    %p145 = scmp.eq.s32.totalorder %s18, 1
    %p146 = por %p144, %p145
    %p147 = scmp.ne.s32.totalorder %s136, %s137
    %p148 = scmp.eq.s32.totalorder %s18, 0
    %p149 = por %p147, %p148
    %p150 = scmp.ne.s32.totalorder %s136, %s137
    %p151 = scmp.eq.s32.totalorder %s19, 1
    %p152 = por %p150, %p151
    %p154 = scmp.ne.s32.totalorder %s137, %s153
    %p155 = scmp.eq.s32.totalorder %s19, 0
    %p156 = por %p154, %p155
    %s157 = ssub.s32 %s13, %s20
    %p158 = scmp.eq.s32.totalorder %s157, 0
    %s160 = sadd.s32 %s159, 1
    %s161 = scalar_select %p158, %s159, %s160
    %p164 = pneg %p158
    %p165 = scmp.eq.s32.totalorder %s13, 1
    %p166 = por %p164, %p165
    %p167 = scmp.ne.s32.totalorder %s159, %s162
    %p168 = scmp.eq.s32.totalorder %s13, 0
    %p169 = por %p167, %p168
    %p170 = scmp.ne.s32.totalorder %s159, %s162
    %p171 = scmp.eq.s32.totalorder %s18, 1
    %p172 = por %p170, %p171
    %p173 = scmp.ne.s32.totalorder %s162, %s163
    %p174 = scmp.eq.s32.totalorder %s18, 0
    %p175 = por %p173, %p174
    %p176 = scmp.ne.s32.totalorder %s162, %s163
    %p177 = scmp.eq.s32.totalorder %s19, 1
    %p178 = por %p176, %p177
    %p180 = scmp.ne.s32.totalorder %s163, %s179
    %p181 = scmp.eq.s32.totalorder %s19, 0
    %p182 = por %p180, %p181
    %p183 = scmp.le.s32.totalorder 1, %s13
    %p184 = scmp.lt.s32.totalorder %s13, 3
    %p185 = pnand %p183, %p184
    %p186 = pneg %p185
    // Predicated region
    $region9: #{convmixer_maxpool_forward.7} parent=5 // pred_check
      _
    $region10: #{convmixer_maxpool_forward.7} parent=5 // pred_check_branch
      %188 = sbr.rel (%p185) target = $region12
    $region11: #{convmixer_maxpool_forward.7} parent=5 // pred_region
      %s189 = ssub.s32 %s13, 1
      // Predicated region
      $region13: #{convmixer_maxpool_forward.7} parent=11 // pred_check
        %p190 = pneg %p60
      $region14: #{convmixer_maxpool_forward.7} parent=11 // pred_check_branch
        %192 = sbr.rel (%p190) target = $region16
      $region15: #{convmixer_maxpool_forward.7} parent=11 // pred_region
        _
      $region16: #{convmixer_maxpool_forward.7} parent=11 // pred_fallthru
        _
      // Predicated region
      $region17: #{convmixer_maxpool_forward.7} parent=11 // pred_check
        %p193 = pneg %p81
      $region18: #{convmixer_maxpool_forward.7} parent=11 // pred_check_branch
        %195 = sbr.rel (%p193) target = $region20
      $region19: #{convmixer_maxpool_forward.7} parent=11 // pred_region
        _
      $region20: #{convmixer_maxpool_forward.7} parent=11 // pred_fallthru
        _
      // Predicated region
      $region21: #{convmixer_maxpool_forward.7} parent=11 // pred_check
        %p196 = pneg %p102
      $region22: #{convmixer_maxpool_forward.7} parent=11 // pred_check_branch
        %198 = sbr.rel (%p196) target = $region24
      $region23: #{convmixer_maxpool_forward.7} parent=11 // pred_region
        _
      $region24: #{convmixer_maxpool_forward.7} parent=11 // pred_fallthru
        _
      // Predicated region
      $region25: #{convmixer_maxpool_forward.7} parent=11 // pred_check
        %p199 = pneg %p123
      $region26: #{convmixer_maxpool_forward.7} parent=11 // pred_check_branch
        %201 = sbr.rel (%p199) target = $region28
      $region27: #{convmixer_maxpool_forward.7} parent=11 // pred_region
        _
      $region28: #{convmixer_maxpool_forward.7} parent=11 // pred_fallthru
        _
    $region12: #{convmixer_maxpool_forward.7} parent=5 // pred_fallthru
      _
    %p202 = scmp.lt.s32.totalorder %s13, 2
    // Predicated region
    $region29: #{convmixer_maxpool_forward.7} parent=5 // pred_check
      %p203 = pneg %p202
    $region30: #{convmixer_maxpool_forward.7} parent=5 // pred_check_branch
      %205 = sbr.rel (%p203) target = $region32
    $region31: #{convmixer_maxpool_forward.7} parent=5 // pred_region
      // Predicated region
      $region33: #{convmixer_maxpool_forward.7} parent=31 // pred_check
        %p206 = pneg %p33
      $region34: #{convmixer_maxpool_forward.7} parent=31 // pred_check_branch
        %208 = sbr.rel (%p206) target = $region36
      $region35: #{convmixer_maxpool_forward.7} parent=31 // pred_region
        %p209 = scmp.lt.s32.totalorder %s13, 1
        %s210 = scalar_select %p209, %s13, 1
        %s211 = smul.addr %s210, 4
        %s212 = smul.addr %s211, 4
        %s213 = scalar_lea.vmem %s0, %s212
      $region36: #{convmixer_maxpool_forward.7} parent=31 // pred_fallthru
        _
    $region32: #{convmixer_maxpool_forward.7} parent=5 // pred_fallthru
      _
    %p214 = scmp.le.s32.totalorder 1, %s13
    %p215 = scmp.lt.s32.totalorder %s13, 3
    %p216 = pnand %p214, %p215
    %p217 = pneg %p216
    // Predicated region
    $region37: #{convmixer_maxpool_forward.7} parent=5 // pred_check
      _
    $region38: #{convmixer_maxpool_forward.7} parent=5 // pred_check_branch
      %219 = sbr.rel (%p216) target = $region40
    $region39: #{convmixer_maxpool_forward.7} parent=5 // pred_region
      %s220 = ssub.s32 %s13, 1
      %p221 = scmp.lt.s32.totalorder %s18, 1
      %s222 = scalar_select %p221, %s18, 1
      %s223 = smul.addr %s222, 4
      %s224 = smul.addr %s223, 4
      %s225 = scalar_lea.vmem %s0, %s224
      %p226 = pneg %p39
      %p227 = pneg %p36
      %p228 = pneg %p60
      %p229 = pneg %p57
      %p230 = pneg %p81
      %p231 = pneg %p78
      %p232 = pneg %p102
      %p233 = pneg %p99
      %p234 = pneg %p123
      %p235 = pneg %p120
      %p236 = pneg %p149
      %p237 = pneg %p146
      %p238 = scmp.lt.s32.totalorder %s18, 1
      %s239 = scalar_select %p238, %s18, 1
      %s240 = smul.addr %s239, 4
      %s241 = smul.addr %s240, 4
      %s242 = scalar_lea.vmem %s5, %s241
      %p243 = pneg %p175
      %p244 = pneg %p172
      %p245 = scmp.lt.s32.totalorder %s18, 1
      %s246 = scalar_select %p245, %s18, 1
      %s247 = smul.addr %s246, 2
      %s248 = scalar_lea.vmem %s6, %s247
      %p249 = scmp.lt.s32.totalorder %s18, 1
      %s250 = scalar_select %p249, %s18, 1
      %s251 = smul.addr %s250, 4
      %s252 = smul.addr %s251, 4
      %s253 = scalar_lea.vmem %s0, %s252
      %p254 = scmp.lt.s32.totalorder %s18, 1
      %s255 = scalar_select %p254, %s18, 1
      %s256 = smul.addr %s255, 4
      %s257 = smul.addr %s256, 4
      %s258 = scalar_lea.vmem %s5, %s257
      %p259 = scmp.lt.s32.totalorder %s18, 1
      %s260 = scalar_select %p259, %s18, 1
      %s261 = smul.addr %s260, 2
      %s262 = scalar_lea.vmem %s6, %s261
      %v263 = vld [vmem:[%s253] sm:$0xf]
      %v264 = vld [vmem:[%s253 + $0x4] sm:$0xf]
      %v265 = vld [vmem:[%s253 + $0x8] sm:$0xf]
      %v266 = vld [vmem:[%s253 + $0xc] sm:$0xf]
      %v267 = vld [vmem:[%s1] sm:$0x1]
      %v269 = vlaneseq
      %v270 = vshrl.u32 %v269, 7
      %v271 = vsub.s32 0, %v270
      %v272 = vrot.slane %v267, %v271
      %v274 = vmul.f32 %v263, %v272
      %v275 = vmul.f32 %v264, %v272
      %v276 = vmul.f32 %v265, %v272
      %v277 = vmul.f32 %v266, %v272
      %v278 = vld [vmem:[%s2] sm:$0x1]
      %v280 = vlaneseq
      %v281 = vshrl.u32 %v280, 7
      %v282 = vsub.s32 0, %v281
      %v283 = vrot.slane %v278, %v282
      %v285 = vadd.f32 %v274, %v283
      %v286 = vadd.f32 %v275, %v283
      %v287 = vadd.f32 %v276, %v283
      %v288 = vadd.f32 %v277, %v283
      %vm289 = vcmask 128000
      %290 = vst.msk [vmem:[#allocation2] sm:$0x3f] %vm289, 0.0
      %291 = vst.msk [vmem:[#allocation2 + $0x8] sm:$0x3f] %vm289, 0.0
      %292 = vst.msk [vmem:[#allocation2 + $0x10] sm:$0x3f] %vm289, 0.0
      %293 = vst.msk [vmem:[#allocation2 + $0x18] sm:$0x3f] %vm289, 0.0
      %294 = vst.msk [vmem:[#allocation2 + $0x20] sm:$0x3f] %vm289, 0.0
      %295 = vst.msk [vmem:[#allocation2 + $0x28] sm:$0x3f] %vm289, 0.0
      %s296 = scalar_lea.vmem [#allocation2], 8
      %vm297 = vcmask 125952
      %298 = vst.msk [vmem:[%s296 + $0x1] sm:$0xf] %vm297, %v285
      %299 = vst.msk [vmem:[%s296 + $0x9] sm:$0xf] %vm297, %v286
      %300 = vst.msk [vmem:[%s296 + $0x11] sm:$0xf] %vm297, %v287
      %301 = vst.msk [vmem:[%s296 + $0x19] sm:$0xf] %vm297, %v288
      %v302 = vld [vmem:[#allocation2] sm:$0x3f]
      %v303 = vld [vmem:[#allocation2 + $0x8] sm:$0x3f]
      %v304 = vld [vmem:[#allocation2 + $0x10] sm:$0x3f]
      %v305 = vld [vmem:[#allocation2 + $0x18] sm:$0x3f]
      %v306 = vld [vmem:[#allocation2 + $0x20] sm:$0x3f]
      %v307 = vld [vmem:[#allocation2 + $0x28] sm:$0x3f]
      %v308 = vld [vmem:[%s3] sm:$0x1]
      %v309 = vld [vmem:[%s3 + $0x1] sm:$0x1]
      %v310 = vld [vmem:[%s3 + $0x2] sm:$0x1]
      %s311 = scalar_lea.vmem %s3, 4
      %v312 = vld [vmem:[%s311] sm:$0x1]
      %v313 = vld [vmem:[%s311 + $0x1] sm:$0x1]
      %v314 = vld [vmem:[%s311 + $0x2] sm:$0x1]
      %s315 = scalar_lea.vmem %s3, 8
      %v316 = vld [vmem:[%s315] sm:$0x1]
      %v317 = vld [vmem:[%s315 + $0x1] sm:$0x1]
      %v318 = vld [vmem:[%s315 + $0x2] sm:$0x1]
      %v319 = vlaneseq
      %v320 = vshrl.u32 %v319, 7
      %v321 = vsub.s32 0, %v320
      %v322 = vrot.slane %v308, %v321
      %v323 = vmul.f32 %v302, %v322
      %v324 = vmul.f32 %v303, %v322
      %v325 = vmul.f32 %v304, %v322
      %v326 = vmul.f32 %v305, %v322
      %v327 = vadd.f32 %v323, 0.0
      %v328 = vadd.f32 %v324, 0.0
      %v329 = vadd.f32 %v325, 0.0
      %v330 = vadd.f32 %v326, 0.0
      %v331 = vlaneseq
      %v332 = vshrl.u32 %v331, 7
      %v333 = vsub.s32 0, %v332
      %v334 = vrot.slane %v309, %v333
      %v335 = vmul.f32 %v302, %v334
      %v336 = vmul.f32 %v303, %v334
      %v337 = vmul.f32 %v304, %v334
      %v338 = vmul.f32 %v305, %v334
      %v343 = vrot.slane %v335, 1
      %v344 = vrot.slane %v336, 1
      %v345 = vrot.slane %v337, 1
      %v346 = vrot.slane %v338, 1
      %v351 = vadd.f32 %v327, %v343
      %v352 = vadd.f32 %v328, %v344
      %v353 = vadd.f32 %v329, %v345
      %v354 = vadd.f32 %v330, %v346
      %v355 = vlaneseq
      %v356 = vshrl.u32 %v355, 7
      %v357 = vsub.s32 0, %v356
      %v358 = vrot.slane %v310, %v357
      %v359 = vmul.f32 %v302, %v358
      %v360 = vmul.f32 %v303, %v358
      %v361 = vmul.f32 %v304, %v358
      %v362 = vmul.f32 %v305, %v358
      %v367 = vrot.slane %v359, 2
      %v368 = vrot.slane %v360, 2
      %v369 = vrot.slane %v361, 2
      %v370 = vrot.slane %v362, 2
      %v375 = vadd.f32 %v351, %v367
      %v376 = vadd.f32 %v352, %v368
      %v377 = vadd.f32 %v353, %v369
      %v378 = vadd.f32 %v354, %v370
      %v379 = vlaneseq
      %v380 = vshrl.u32 %v379, 7
      %v381 = vsub.s32 0, %v380
      %v382 = vrot.slane %v312, %v381
      %v383 = vmul.f32 %v303, %v382
      %v384 = vmul.f32 %v304, %v382
      %v385 = vmul.f32 %v305, %v382
      %v386 = vmul.f32 %v306, %v382
      %v387 = vadd.f32 %v375, %v383
      %v388 = vadd.f32 %v376, %v384
      %v389 = vadd.f32 %v377, %v385
      %v390 = vadd.f32 %v378, %v386
      %v391 = vlaneseq
      %v392 = vshrl.u32 %v391, 7
      %v393 = vsub.s32 0, %v392
      %v394 = vrot.slane %v313, %v393
      %v395 = vmul.f32 %v303, %v394
      %v396 = vmul.f32 %v304, %v394
      %v397 = vmul.f32 %v305, %v394
      %v398 = vmul.f32 %v306, %v394
      %v403 = vrot.slane %v395, 1
      %v404 = vrot.slane %v396, 1
      %v405 = vrot.slane %v397, 1
      %v406 = vrot.slane %v398, 1
      %v411 = vadd.f32 %v387, %v403
      %v412 = vadd.f32 %v388, %v404
      %v413 = vadd.f32 %v389, %v405
      %v414 = vadd.f32 %v390, %v406
      %v415 = vlaneseq
      %v416 = vshrl.u32 %v415, 7
      %v417 = vsub.s32 0, %v416
      %v418 = vrot.slane %v314, %v417
      %v419 = vmul.f32 %v303, %v418
      %v420 = vmul.f32 %v304, %v418
      %v421 = vmul.f32 %v305, %v418
      %v422 = vmul.f32 %v306, %v418
      %v427 = vrot.slane %v419, 2
      %v428 = vrot.slane %v420, 2
      %v429 = vrot.slane %v421, 2
      %v430 = vrot.slane %v422, 2
      %v435 = vadd.f32 %v411, %v427
      %v436 = vadd.f32 %v412, %v428
      %v437 = vadd.f32 %v413, %v429
      %v438 = vadd.f32 %v414, %v430
      %v439 = vlaneseq
      %v440 = vshrl.u32 %v439, 7
      %v441 = vsub.s32 0, %v440
      %v442 = vrot.slane %v316, %v441
      %v443 = vmul.f32 %v304, %v442
      %v444 = vmul.f32 %v305, %v442
      %v445 = vmul.f32 %v306, %v442
      %v446 = vmul.f32 %v307, %v442
      %v447 = vadd.f32 %v435, %v443
      %v448 = vadd.f32 %v436, %v444
      %v449 = vadd.f32 %v437, %v445
      %v450 = vadd.f32 %v438, %v446
      %v451 = vlaneseq
      %v452 = vshrl.u32 %v451, 7
      %v453 = vsub.s32 0, %v452
      %v454 = vrot.slane %v317, %v453
      %v455 = vmul.f32 %v304, %v454
      %v456 = vmul.f32 %v305, %v454
      %v457 = vmul.f32 %v306, %v454
      %v458 = vmul.f32 %v307, %v454
      %v463 = vrot.slane %v455, 1
      %v464 = vrot.slane %v456, 1
      %v465 = vrot.slane %v457, 1
      %v466 = vrot.slane %v458, 1
      %v471 = vadd.f32 %v447, %v463
      %v472 = vadd.f32 %v448, %v464
      %v473 = vadd.f32 %v449, %v465
      %v474 = vadd.f32 %v450, %v466
      %v475 = vlaneseq
      %v476 = vshrl.u32 %v475, 7
      %v477 = vsub.s32 0, %v476
      %v478 = vrot.slane %v318, %v477
      %v479 = vmul.f32 %v304, %v478
      %v480 = vmul.f32 %v305, %v478
      %v481 = vmul.f32 %v306, %v478
      %v482 = vmul.f32 %v307, %v478
      %v487 = vrot.slane %v479, 2
      %v488 = vrot.slane %v480, 2
      %v489 = vrot.slane %v481, 2
      %v490 = vrot.slane %v482, 2
      %v495 = vadd.f32 %v471, %v487
      %v496 = vadd.f32 %v472, %v488
      %v497 = vadd.f32 %v473, %v489
      %v498 = vadd.f32 %v474, %v490
      %v499 = vld [vmem:[%s4] sm:$0x1]
      %v501 = vlaneseq
      %v502 = vshrl.u32 %v501, 7
      %v503 = vsub.s32 0, %v502
      %v504 = vrot.slane %v499, %v503
      %v506 = vadd.f32 %v495, %v504
      %v507 = vadd.f32 %v496, %v504
      %v508 = vadd.f32 %v497, %v504
      %v509 = vadd.f32 %v498, %v504
      %vm510 = vcmp.gt.f32.partialorder %v506, 0.0
      %vm511 = vcmp.gt.f32.partialorder %v507, 0.0
      %vm512 = vcmp.gt.f32.partialorder %v508, 0.0
      %vm513 = vcmp.gt.f32.partialorder %v509, 0.0
      %v514 = vmul.f32 %v506, 1.442695
      %v515 = vpow.pop %v514
      %v516 = vmul.f32 %v507, 1.442695
      %v517 = vpow.pop %v516
      %v518 = vmul.f32 %v508, 1.442695
      %v519 = vpow.pop %v518
      %v520 = vmul.f32 %v509, 1.442695
      %v521 = vpow.pop %v520
      %v522 = vsub.f32 %v515, 1.0
      %v523 = vsub.f32 %v517, 1.0
      %v524 = vsub.f32 %v519, 1.0
      %v525 = vsub.f32 %v521, 1.0
      %v526 = vmul.f32 %v522, 1.6732632
      %v527 = vmul.f32 %v523, 1.6732632
      %v528 = vmul.f32 %v524, 1.6732632
      %v529 = vmul.f32 %v525, 1.6732632
      %v530 = vsel %vm510, %v506, %v526
      %v531 = vsel %vm511, %v507, %v527
      %v532 = vsel %vm512, %v508, %v528
      %v533 = vsel %vm513, %v509, %v529
      %v534 = vmul.f32 %v530, 1.050701
      %v535 = vmul.f32 %v531, 1.050701
      %v536 = vmul.f32 %v532, 1.050701
      %v537 = vmul.f32 %v533, 1.050701
      %538 = vst.msk [vmem:[%s258] sm:$0xf] %vm297, %v534
      %539 = vst.msk [vmem:[%s258 + $0x4] sm:$0xf] %vm297, %v535
      %540 = vst.msk [vmem:[%s258 + $0x8] sm:$0xf] %vm297, %v536
      %541 = vst.msk [vmem:[%s258 + $0xc] sm:$0xf] %vm297, %v537
      %v542 = vsel %vm297, %v534, 0.0
      %v543 = vsel %vm297, %v535, 0.0
      %v544 = vadd.f32 %v542, %v543
      %v545 = vsel %vm297, %v536, 0.0
      %v546 = vadd.f32 %v544, %v545
      %v547 = vsel %vm297, %v537, 0.0
      %v548 = vadd.f32 %v546, %v547
      %v549 = vmul.f32 %v534, %v534
      %v550 = vmul.f32 %v535, %v535
      %v551 = vmul.f32 %v536, %v536
      %v552 = vmul.f32 %v537, %v537
      %v553 = vsel %vm297, %v549, 0.0
      %v554 = vsel %vm297, %v550, 0.0
      %v555 = vadd.f32 %v553, %v554
      %v556 = vsel %vm297, %v551, 0.0
      %v557 = vadd.f32 %v555, %v556
      %v558 = vsel %vm297, %v552, 0.0
      %v559 = vadd.f32 %v557, %v558
      %v560 = vsel %vm297, %v548, 0.0
      %v561 = vrot.slane %v560, 4
      %v562 = vadd.f32 %v560, %v561
      %v563 = vrot.slane %v562, 2
      %v564 = vadd.f32 %v562, %v563
      %v565 = vrot.slane %v564, 1
      %v566 = vadd.f32 %v564, %v565
      %vm567 = vcmask 122880
      %568 = vst.msk [vmem:[%s262] sm:$0x1] %vm567, %v566
      %v569 = vsel %vm297, %v559, 0.0
      %v570 = vrot.slane %v569, 4
      %v571 = vadd.f32 %v569, %v570
      %v572 = vrot.slane %v571, 2
      %v573 = vadd.f32 %v571, %v572
      %v574 = vrot.slane %v573, 1
      %v575 = vadd.f32 %v573, %v574
      %576 = vst.msk [vmem:[%s262 + $0x1] sm:$0x1] %vm567, %v575
      %p577 = scmp.lt.s32.totalorder %s18, 1
      %s578 = scalar_select %p577, %s18, 1
      %s579 = smul.addr %s578, 4
      %s580 = smul.addr %s579, 4
      %s581 = scalar_lea.vmem %s5, %s580
      %p582 = scmp.lt.s32.totalorder %s18, 1
      %s583 = scalar_select %p582, %s18, 1
      %s584 = smul.addr %s583, 2
      %s585 = scalar_lea.vmem %s6, %s584
      // Predicated region
      $region41: #{convmixer_maxpool_forward.7} parent=39 // pred_check
        %p586 = pneg %p146
      $region42: #{convmixer_maxpool_forward.7} parent=39 // pred_check_branch
        %588 = sbr.rel (%p586) target = $region44
      $region43: #{convmixer_maxpool_forward.7} parent=39 // pred_region
        _
      $region44: #{convmixer_maxpool_forward.7} parent=39 // pred_fallthru
        _
      // Predicated region
      $region45: #{convmixer_maxpool_forward.7} parent=39 // pred_check
        %p589 = pneg %p172
      $region46: #{convmixer_maxpool_forward.7} parent=39 // pred_check_branch
        %591 = sbr.rel (%p589) target = $region48
      $region47: #{convmixer_maxpool_forward.7} parent=39 // pred_region
        _
      $region48: #{convmixer_maxpool_forward.7} parent=39 // pred_fallthru
        _
    $region40: #{convmixer_maxpool_forward.7} parent=5 // pred_fallthru
      _
    %p592 = scmp.le.s32.totalorder 2, %s13
    // Predicated region
    $region49: #{convmixer_maxpool_forward.7} parent=5 // pred_check
      %p593 = pneg %p592
    $region50: #{convmixer_maxpool_forward.7} parent=5 // pred_check_branch
      %595 = sbr.rel (%p593) target = $region52
    $region51: #{convmixer_maxpool_forward.7} parent=5 // pred_region
      %s596 = ssub.s32 %s13, 2
      // Predicated region
      $region53: #{convmixer_maxpool_forward.7} parent=51 // pred_check
        %p597 = pneg %p152
      $region54: #{convmixer_maxpool_forward.7} parent=51 // pred_check_branch
        %599 = sbr.rel (%p597) target = $region56
      $region55: #{convmixer_maxpool_forward.7} parent=51 // pred_region
        %p600 = scmp.lt.s32.totalorder %s19, 1
        %s601 = scalar_select %p600, %s19, 1
        %s602 = smul.addr %s601, 4
        %s603 = smul.addr %s602, 4
        %s604 = scalar_lea.vmem %s5, %s603
      $region56: #{convmixer_maxpool_forward.7} parent=51 // pred_fallthru
        _
      // Predicated region
      $region57: #{convmixer_maxpool_forward.7} parent=51 // pred_check
        %p605 = pneg %p178
      $region58: #{convmixer_maxpool_forward.7} parent=51 // pred_check_branch
        %607 = sbr.rel (%p605) target = $region60
      $region59: #{convmixer_maxpool_forward.7} parent=51 // pred_region
        %p608 = scmp.lt.s32.totalorder %s19, 1
        %s609 = scalar_select %p608, %s19, 1
        %s610 = smul.addr %s609, 2
        %s611 = scalar_lea.vmem %s6, %s610
      $region60: #{convmixer_maxpool_forward.7} parent=51 // pred_fallthru
        _
    $region52: #{convmixer_maxpool_forward.7} parent=5 // pred_fallthru
      _
  $region6: #{convmixer_maxpool_forward.7} parent=0 // loop_footer
    %s17 = sadd.s32 1, %s13
  $region7: #{convmixer_maxpool_forward.7} parent=0 // loop_footer_branch
    %12 = sbr.rel target = $region3
  $region8: #{convmixer_maxpool_forward.7} parent=0 // loop_exit
    _

// kernel: convmixer_maxpool_forward.8
$region0: #{convmixer_maxpool_forward.8}
  #allocation0 [shape = 'u32[]', space=smem, size = 0x4, offset = 0x4, fixed_abs, tag = 'smem constant byte address 0x4 - core index']
  #allocation1 [shape = 'u32[144,128]{1,0:T(1,128)}', space=vmem, size = 0x12000, scoped, tag = 'internal scratch']
  %s0 = inlined_call_operand.vmem [shape: f32[32,16], index: 0, kind: input, shape index: {}]
  %s1 = inlined_call_operand.vmem [shape: f32[1,16], index: 1, kind: input, shape index: {}]
  %s2 = inlined_call_operand.vmem [shape: f32[1,16], index: 2, kind: input, shape index: {}]
  %s3 = inlined_call_operand.vmem [shape: f32[32,16], index: 3, kind: input, shape index: {}]
  %s4 = inlined_call_operand.vmem [shape: f32[1,16], index: 4, kind: input, shape index: {}]
  %s5 = inlined_call_operand.vmem [shape: f32[1,16], index: 5, kind: input, shape index: {}]
  %s6 = inlined_call_operand.vmem [shape: bf16[16,16], index: 6, kind: input, shape index: {}]
  %s7 = inlined_call_operand.vmem [shape: f32[1,16], index: 7, kind: input, shape index: {}]
  %s8 = inlined_call_operand.vmem [shape: f32[32,16], index: 8, kind: output, shape index: {0}]
  %s9 = inlined_call_operand.vmem [shape: f32[1,2,16], index: 9, kind: output, shape index: {1}]
  %10 = xla_tuple %s8, %s9
  %s11 = sld [smem:[#allocation0]]
  $region50: #{convmixer_maxpool_forward.8} parent=0
    _
  %s13 = ssub.s32 1, %s11
  %s14 = scalar_select 0, %s13, %s11
  // Predicated region
  $region2: #{convmixer_maxpool_forward.8} parent=0 // pred_check
    _
  $region3: #{convmixer_maxpool_forward.8} parent=0 // pred_check_branch
    %16 = sbr.rel (0) target = $region5
  $region4: #{convmixer_maxpool_forward.8} parent=0 // pred_region
    _
  $region5: #{convmixer_maxpool_forward.8} parent=0 // pred_fallthru
    _
  // Predicated region
  $region6: #{convmixer_maxpool_forward.8} parent=0 // pred_check
    _
  $region7: #{convmixer_maxpool_forward.8} parent=0 // pred_check_branch
    %18 = sbr.rel (0) target = $region9
  $region8: #{convmixer_maxpool_forward.8} parent=0 // pred_region
    _
  $region9: #{convmixer_maxpool_forward.8} parent=0 // pred_fallthru
    _
  // Predicated region
  $region10: #{convmixer_maxpool_forward.8} parent=0 // pred_check
    _
  $region11: #{convmixer_maxpool_forward.8} parent=0 // pred_check_branch
    %20 = sbr.rel (0) target = $region13
  $region12: #{convmixer_maxpool_forward.8} parent=0 // pred_region
    _
  $region13: #{convmixer_maxpool_forward.8} parent=0 // pred_fallthru
    _
  // Predicated region
  $region14: #{convmixer_maxpool_forward.8} parent=0 // pred_check
    _
  $region15: #{convmixer_maxpool_forward.8} parent=0 // pred_check_branch
    %22 = sbr.rel (0) target = $region17
  $region16: #{convmixer_maxpool_forward.8} parent=0 // pred_region
    _
  $region17: #{convmixer_maxpool_forward.8} parent=0 // pred_fallthru
    _
  // Predicated region
  $region18: #{convmixer_maxpool_forward.8} parent=0 // pred_check
    _
  $region19: #{convmixer_maxpool_forward.8} parent=0 // pred_check_branch
    %24 = sbr.rel (0) target = $region21
  $region20: #{convmixer_maxpool_forward.8} parent=0 // pred_region
    _
  $region21: #{convmixer_maxpool_forward.8} parent=0 // pred_fallthru
    _
  // Predicated region
  $region22: #{convmixer_maxpool_forward.8} parent=0 // pred_check
    _
  $region23: #{convmixer_maxpool_forward.8} parent=0 // pred_check_branch
    %26 = sbr.rel (0) target = $region25
  $region24: #{convmixer_maxpool_forward.8} parent=0 // pred_region
    _
  $region25: #{convmixer_maxpool_forward.8} parent=0 // pred_fallthru
    _
  // Predicated region
  $region26: #{convmixer_maxpool_forward.8} parent=0 // pred_check
    _
  $region27: #{convmixer_maxpool_forward.8} parent=0 // pred_check_branch
    %28 = sbr.rel (0) target = $region29
  $region28: #{convmixer_maxpool_forward.8} parent=0 // pred_region
    _
  $region29: #{convmixer_maxpool_forward.8} parent=0 // pred_fallthru
    _
  // Predicated region
  $region30: #{convmixer_maxpool_forward.8} parent=0 // pred_check
    _
  $region31: #{convmixer_maxpool_forward.8} parent=0 // pred_check_branch
    %30 = sbr.rel (0) target = $region33
  $region32: #{convmixer_maxpool_forward.8} parent=0 // pred_region
    _
  $region33: #{convmixer_maxpool_forward.8} parent=0 // pred_fallthru
    _
  %v32 = vld [vmem:[%s0] sm:$0xff]
  %v33 = vld [vmem:[%s0 + $0x8] sm:$0xff]
  %v34 = vld [vmem:[%s0 + $0x10] sm:$0xff]
  %v35 = vld [vmem:[%s0 + $0x18] sm:$0xff]
  %v36 = vld [vmem:[%s1] sm:$0x1]
  %v38 = vlaneseq
  %v39 = vshrl.u32 %v38, 7
  %v40 = vsub.s32 0, %v39
  %v41 = vrot.slane %v36, %v40
  %v43 = vmul.f32 %v32, %v41
  %v44 = vmul.f32 %v33, %v41
  %v45 = vmul.f32 %v34, %v41
  %v46 = vmul.f32 %v35, %v41
  %v47 = vld [vmem:[%s2] sm:$0x1]
  %v49 = vlaneseq
  %v50 = vshrl.u32 %v49, 7
  %v51 = vsub.s32 0, %v50
  %v52 = vrot.slane %v47, %v51
  %v54 = vadd.f32 %v43, %v52
  %v55 = vadd.f32 %v44, %v52
  %v56 = vadd.f32 %v45, %v52
  %v57 = vadd.f32 %v46, %v52
  %v58 = vld [vmem:[%s3] sm:$0xff]
  %v59 = vld [vmem:[%s3 + $0x8] sm:$0xff]
  %v60 = vld [vmem:[%s3 + $0x10] sm:$0xff]
  %v61 = vld [vmem:[%s3 + $0x18] sm:$0xff]
  %v62 = vld [vmem:[%s4] sm:$0x1]
  %v64 = vlaneseq
  %v65 = vshrl.u32 %v64, 7
  %v66 = vsub.s32 0, %v65
  %v67 = vrot.slane %v62, %v66
  %v69 = vmul.f32 %v58, %v67
  %v70 = vmul.f32 %v59, %v67
  %v71 = vmul.f32 %v60, %v67
  %v72 = vmul.f32 %v61, %v67
  %v73 = vadd.f32 %v54, %v69
  %v74 = vadd.f32 %v55, %v70
  %v75 = vadd.f32 %v56, %v71
  %v76 = vadd.f32 %v57, %v72
  %v77 = vld [vmem:[%s5] sm:$0x1]
  %v79 = vlaneseq
  %v80 = vshrl.u32 %v79, 7
  %v81 = vsub.s32 0, %v80
  %v82 = vrot.slane %v77, %v81
  %v84 = vadd.f32 %v73, %v82
  %v85 = vadd.f32 %v74, %v82
  %v86 = vadd.f32 %v75, %v82
  %v87 = vadd.f32 %v76, %v82
  %v88 = vpack.c.bf16 %v85, %v84
  %v89 = vpack.c.bf16 %v87, %v86
  %v90 = vld [vmem:[%s6] sm:$0xf]
  %v91 = vld [vmem:[%s6 + $0x4] sm:$0xf]
  %v92 = vld [vmem:[%s7] sm:$0x1]
  %v94 = vlaneseq
  %v95 = vshrl.u32 %v94, 7
  %v96 = vsub.s32 0, %v95
  %v97 = vrot.slane %v92, %v96
  %v101 = vunpack.c.l.b16 %v90
  %v102 = vunpack.c.l.b16 %v91
  %v103 = vpack.c.b16 %v102, %v101
  %vm105 = vcmask 130048
  %v107 = vsel %vm105, %v88, 0
  %v110 = vsel %vm105, %v89, 0
  %112 = vmatprep.subr.bf16.mxu0 0
  %113 = vmatpush1.bf16.msra.mxu0 0
  %114 = vmatprep.subr.bf16.mxu0 0
  %115 = vmatpush1.bf16.msra.mxu0 0
  %116 = vmatprep.subr.bf16.mxu0 0
  %117 = vmatpush1.bf16.msra.mxu0 0
  %118 = vmatprep.subr.bf16.mxu0 0
  %119 = vmatpush1.bf16.msra.mxu0 0
  %120 = vmatprep.subr.bf16.mxu0 0
  %121 = vmatpush1.bf16.msra.mxu0 0
  %122 = vmatprep.subr.bf16.mxu0 0
  %123 = vmatpush1.bf16.msra.mxu0 0
  %124 = vmatprep.subr.bf16.mxu0 0
  %125 = vmatpush1.bf16.msra.mxu0 0
  %126 = vmatprep.subr.bf16.mxu0 0
  %127 = vmatpush1.bf16.msra.mxu0 %v103
  %128 = vmatprep.subr.bf16.mxu0 0
  %129 = vmatpush2.bf16.msra.mxu0 0
  %130 = vmatprep.subr.bf16.mxu0 0
  %131 = vmatpush2.bf16.msra.mxu0 0
  %132 = vmatprep.subr.bf16.mxu0 0
  %133 = vmatpush2.bf16.msra.mxu0 0
  %134 = vmatprep.subr.bf16.mxu0 0
  %135 = vmatpush2.bf16.msra.mxu0 0
  %136 = vmatprep.subr.bf16.mxu0 0
  %137 = vmatpush2.bf16.msra.mxu0 0
  %138 = vmatprep.subr.bf16.mxu0 0
  %139 = vmatpush2.bf16.msra.mxu0 0
  %140 = vmatprep.subr.bf16.mxu0 0
  %141 = vmatpush2.bf16.msra.mxu0 0
  %142 = vmatprep.subr.bf16.mxu0 0
  %143 = vmatpush2.bf16.msra.mxu0 0
  %144 = vmatprep.mubr.bf16.mxu0 0
  %145 = vmatmul.mubr.bf16.gmra.mxu0 %v107
  %v146 = vpop.f32.mrf.mxu0
  %v147 = vadd.f32 %v97, %v146
  %v148 = vpop.f32.mrf.mxu0
  %v149 = vpop.f32.mrf.mxu0
  %v150 = vadd.f32 %v97, %v149
  %v151 = vpop.f32.mrf.mxu0
  %152 = vmatprep.mubr.bf16.mxu0 0
  %153 = vmatmul.mubr.bf16.gmra.mxu0 %v110
  %v154 = vpop.f32.mrf.mxu0
  %v155 = vadd.f32 %v97, %v154
  %v156 = vpop.f32.mrf.mxu0
  %v157 = vpop.f32.mrf.mxu0
  %v158 = vadd.f32 %v97, %v157
  %v159 = vpop.f32.mrf.mxu0
  %160 = vdwg.mxu0
  %vm161 = vcmp.gt.f32.partialorder %v147, 0.0
  %vm162 = vcmp.gt.f32.partialorder %v150, 0.0
  %vm163 = vcmp.gt.f32.partialorder %v155, 0.0
  %vm164 = vcmp.gt.f32.partialorder %v158, 0.0
  %v165 = vmul.f32 %v147, 1.442695
  %v166 = vpow.pop %v165
  %v167 = vmul.f32 %v150, 1.442695
  %v168 = vpow.pop %v167
  %v169 = vmul.f32 %v155, 1.442695
  %v170 = vpow.pop %v169
  %v171 = vmul.f32 %v158, 1.442695
  %v172 = vpow.pop %v171
  %v173 = vsub.f32 %v166, 1.0
  %v174 = vsub.f32 %v168, 1.0
  %v175 = vsub.f32 %v170, 1.0
  %v176 = vsub.f32 %v172, 1.0
  %v177 = vmul.f32 %v173, 1.6732632
  %v178 = vmul.f32 %v174, 1.6732632
  %v179 = vmul.f32 %v175, 1.6732632
  %v180 = vmul.f32 %v176, 1.6732632
  %v181 = vsel %vm161, %v147, %v177
  %v182 = vsel %vm162, %v150, %v178
  %v183 = vsel %vm163, %v155, %v179
  %v184 = vsel %vm164, %v158, %v180
  %v185 = vmul.f32 %v181, 1.050701
  %v186 = vmul.f32 %v182, 1.050701
  %v187 = vmul.f32 %v183, 1.050701
  %v188 = vmul.f32 %v184, 1.050701
  %189 = vst.msk [vmem:[%s8] sm:$0xff] %vm105, %v185
  %190 = vst.msk [vmem:[%s8 + $0x8] sm:$0xff] %vm105, %v186
  %191 = vst.msk [vmem:[%s8 + $0x10] sm:$0xff] %vm105, %v187
  %192 = vst.msk [vmem:[%s8 + $0x18] sm:$0xff] %vm105, %v188
  %v193 = vsel %vm105, %v185, 0.0
  %v194 = vsel %vm105, %v186, 0.0
  %v195 = vadd.f32 %v193, %v194
  %v196 = vsel %vm105, %v187, 0.0
  %v197 = vadd.f32 %v195, %v196
  %v198 = vsel %vm105, %v188, 0.0
  %v199 = vadd.f32 %v197, %v198
  %v200 = vrot.slane %v199, 4
  %v201 = vadd.f32 %v199, %v200
  %v202 = vrot.slane %v201, 2
  %v203 = vadd.f32 %v201, %v202
  %v204 = vrot.slane %v203, 1
  %v205 = vadd.f32 %v203, %v204
  %vm206 = vcmask 122880
  %207 = vst.msk [vmem:[%s9] sm:$0x1] %vm206, %v205
  %v208 = vmul.f32 %v185, %v185
  %v209 = vmul.f32 %v186, %v186
  %v210 = vmul.f32 %v187, %v187
  %v211 = vmul.f32 %v188, %v188
  %v212 = vsel %vm105, %v208, 0.0
  %v213 = vsel %vm105, %v209, 0.0
  %v214 = vadd.f32 %v212, %v213
  %v215 = vsel %vm105, %v210, 0.0
  %v216 = vadd.f32 %v214, %v215
  %v217 = vsel %vm105, %v211, 0.0
  %v218 = vadd.f32 %v216, %v217
  %v219 = vrot.slane %v218, 4
  %v220 = vadd.f32 %v218, %v219
  %v221 = vrot.slane %v220, 2
  %v222 = vadd.f32 %v220, %v221
  %v223 = vrot.slane %v222, 1
  %v224 = vadd.f32 %v222, %v223
  %225 = vst.msk [vmem:[%s9 + $0x1] sm:$0x1] %vm206, %v224
  // Predicated region
  $region34: #{convmixer_maxpool_forward.8} parent=0 // pred_check
    _
  $region35: #{convmixer_maxpool_forward.8} parent=0 // pred_check_branch
    %227 = sbr.rel (0) target = $region37
  $region36: #{convmixer_maxpool_forward.8} parent=0 // pred_region
    _
  $region37: #{convmixer_maxpool_forward.8} parent=0 // pred_fallthru
    _
  // Predicated region
  $region38: #{convmixer_maxpool_forward.8} parent=0 // pred_check
    _
  $region39: #{convmixer_maxpool_forward.8} parent=0 // pred_check_branch
    %229 = sbr.rel (0) target = $region41
  $region40: #{convmixer_maxpool_forward.8} parent=0 // pred_region
    _
  $region41: #{convmixer_maxpool_forward.8} parent=0 // pred_fallthru
    _
  // Predicated region
  $region42: #{convmixer_maxpool_forward.8} parent=0 // pred_check
    _
  $region43: #{convmixer_maxpool_forward.8} parent=0 // pred_check_branch
    %231 = sbr.rel (0) target = $region45
  $region44: #{convmixer_maxpool_forward.8} parent=0 // pred_region
    _
  $region45: #{convmixer_maxpool_forward.8} parent=0 // pred_fallthru
    _
  // Predicated region
  $region46: #{convmixer_maxpool_forward.8} parent=0 // pred_check
    _
  $region47: #{convmixer_maxpool_forward.8} parent=0 // pred_check_branch
    %233 = sbr.rel (0) target = $region49
  $region48: #{convmixer_maxpool_forward.8} parent=0 // pred_region
    _
  $region49: #{convmixer_maxpool_forward.8} parent=0 // pred_fallthru
    _

// kernel: convmixer_maxpool_forward.11
$region0: #{convmixer_maxpool_forward.11}
  #allocation0 [shape = 'u32[]', space=smem, size = 0x4, offset = 0x4, fixed_abs, tag = 'smem constant byte address 0x4 - core index']
  #allocation1 [shape = 'u32[144,128]{1,0:T(1,128)}', space=vmem, size = 0x12000, scoped, tag = 'internal scratch']
  %s0 = inlined_call_operand.vmem [shape: f32[2,4,2,32], index: 0, kind: input, shape index: {}]
  %s1 = inlined_call_operand.vmem [shape: f32[1,16], index: 1, kind: input, shape index: {}]
  %s2 = inlined_call_operand.vmem [shape: f32[1,16], index: 2, kind: input, shape index: {}]
  %s3 = inlined_call_operand.vmem [shape: f32[2,4,2,32], index: 3, kind: input, shape index: {}]
  %s4 = inlined_call_operand.vmem [shape: f32[1,16], index: 4, kind: input, shape index: {}]
  %s5 = inlined_call_operand.vmem [shape: f32[1,16], index: 5, kind: input, shape index: {}]
  %s6 = inlined_call_operand.hbm [shape: f32[2,2,2,16], index: 6, kind: output, shape index: {}]
  %s7 = sld [smem:[#allocation0]]
  $region57: #{convmixer_maxpool_forward.11} parent=0
    _
  %s9 = ssub.s32 1, %s7
  %s10 = scalar_select 0, %s9, %s7
  $region1: #{convmixer_maxpool_forward.11} parent=0
    #allocation2 [shape = 'u8[4096]{0}', space=vmem, size = 0x1000, scoped, tag = 'output window, operand 0']
    #allocation3 [shape = 's32[2]{0}', space=sflag, size = 0x8, scoped, tag = 'scoped memory for convmixer_maxpool_forward.11']
    %11 = vsyncpa [#allocation3], 0
    %s12 = scalar_lea.sflag [#allocation3], 1
    %13 = vsyncpa %s12, 0
    loop: start=0, step=1, limit=4
    $region2: #{convmixer_maxpool_forward.11} parent=1 // loop_pre_header
      _
    $region3: #{convmixer_maxpool_forward.11} parent=1 // loop_header
      %s15 = sphi 0, %s19
      %p16 = scmp.ge.s32.totalorder %s15, 4
      %s25 = sphi 0, %s27
      %s28 = sphi 0, %s25
      %s29 = sphi 0, %s28
      %s45 = sphi 0, %s29
      %s49 = sphi 0, %s49
      %s51 = sphi 0, %s49
      %s52 = sphi 0, %s51
      %s66 = sphi 0, %s52
      %s70 = sphi 0, %s70
      %s72 = sphi 0, %s70
      %s73 = sphi 0, %s72
      %s87 = sphi 0, %s73
      %s93 = sphi 0, %s95
      %s96 = sphi 0, %s93
      %s97 = sphi 0, %s96
      %s113 = sphi 0, %s97
      %s117 = sphi 0, %s117
      %s119 = sphi 0, %s117
      %s120 = sphi 0, %s119
      %s134 = sphi 0, %s120
      %s138 = sphi 0, %s138
      %s140 = sphi 0, %s138
      %s141 = sphi 0, %s140
      %s155 = sphi 0, %s141
      %s161 = sphi 0, %s163
      %s164 = sphi 0, %s161
      %s165 = sphi 0, %s164
      %s181 = sphi 0, %s165
    $region4: #{convmixer_maxpool_forward.11} parent=1 // loop_header_branch
      %18 = sbr.rel (%p16) target = $region8
    $region5: #{convmixer_maxpool_forward.11} parent=1 // loop_body
      %s20 = ssub.s32 %s15, 1
      %s21 = ssub.s32 %s15, 2
      %s22 = sadd.s32 %s15, 1
      %s23 = ssub.s32 %s15, %s22
      %p24 = scmp.eq.s32.totalorder %s23, 0
      %s26 = sadd.s32 %s25, 1
      %s27 = scalar_select %p24, %s25, %s26
      %p30 = pneg %p24
      %p31 = scmp.eq.s32.totalorder %s15, 1
      %p32 = por %p30, %p31
      %p33 = scmp.ne.s32.totalorder %s25, %s28
      %p34 = scmp.eq.s32.totalorder %s15, 0
      %p35 = por %p33, %p34
      %p36 = scmp.ne.s32.totalorder %s25, %s28
      %p37 = scmp.eq.s32.totalorder %s20, 1
      %p38 = por %p36, %p37
      %p39 = scmp.ne.s32.totalorder %s28, %s29
      %p40 = scmp.eq.s32.totalorder %s20, 0
      %p41 = por %p39, %p40
      %p42 = scmp.ne.s32.totalorder %s28, %s29
      %p43 = scmp.eq.s32.totalorder %s21, 1
      %p44 = por %p42, %p43
      %p46 = scmp.ne.s32.totalorder %s29, %s45
      %p47 = scmp.eq.s32.totalorder %s21, 0
      %p48 = por %p46, %p47
      %s50 = sadd.s32 %s49, 1
      %p53 = scmp.eq.s32.totalorder %s15, 1
      %p54 = scmp.ne.s32.totalorder %s49, %s51
      %p55 = scmp.eq.s32.totalorder %s15, 0
      %p56 = por %p54, %p55
      %p57 = scmp.ne.s32.totalorder %s49, %s51
      %p58 = scmp.eq.s32.totalorder %s20, 1
      %p59 = por %p57, %p58
      %p60 = scmp.ne.s32.totalorder %s51, %s52
      %p61 = scmp.eq.s32.totalorder %s20, 0
      %p62 = por %p60, %p61
      %p63 = scmp.ne.s32.totalorder %s51, %s52
      %p64 = scmp.eq.s32.totalorder %s21, 1
      %p65 = por %p63, %p64
      %p67 = scmp.ne.s32.totalorder %s52, %s66
      %p68 = scmp.eq.s32.totalorder %s21, 0
      %p69 = por %p67, %p68
      %s71 = sadd.s32 %s70, 1
      %p74 = scmp.eq.s32.totalorder %s15, 1
      %p75 = scmp.ne.s32.totalorder %s70, %s72
      %p76 = scmp.eq.s32.totalorder %s15, 0
      %p77 = por %p75, %p76
      %p78 = scmp.ne.s32.totalorder %s70, %s72
      %p79 = scmp.eq.s32.totalorder %s20, 1
      %p80 = por %p78, %p79
      %p81 = scmp.ne.s32.totalorder %s72, %s73
      %p82 = scmp.eq.s32.totalorder %s20, 0
      %p83 = por %p81, %p82
      %p84 = scmp.ne.s32.totalorder %s72, %s73
      %p85 = scmp.eq.s32.totalorder %s21, 1
      %p86 = por %p84, %p85
      %p88 = scmp.ne.s32.totalorder %s73, %s87
      %p89 = scmp.eq.s32.totalorder %s21, 0
      %p90 = por %p88, %p89
      %s91 = ssub.s32 %s15, %s22
      %p92 = scmp.eq.s32.totalorder %s91, 0
      %s94 = sadd.s32 %s93, 1
      %s95 = scalar_select %p92, %s93, %s94
      %p98 = pneg %p92
      %p99 = scmp.eq.s32.totalorder %s15, 1
      %p100 = por %p98, %p99
      %p101 = scmp.ne.s32.totalorder %s93, %s96
      %p102 = scmp.eq.s32.totalorder %s15, 0
      %p103 = por %p101, %p102
      %p104 = scmp.ne.s32.totalorder %s93, %s96
      %p105 = scmp.eq.s32.totalorder %s20, 1
      %p106 = por %p104, %p105
      %p107 = scmp.ne.s32.totalorder %s96, %s97
      %p108 = scmp.eq.s32.totalorder %s20, 0
      %p109 = por %p107, %p108
      %p110 = scmp.ne.s32.totalorder %s96, %s97
      %p111 = scmp.eq.s32.totalorder %s21, 1
      %p112 = por %p110, %p111
      %p114 = scmp.ne.s32.totalorder %s97, %s113
      %p115 = scmp.eq.s32.totalorder %s21, 0
      %p116 = por %p114, %p115
      %s118 = sadd.s32 %s117, 1
      %p121 = scmp.eq.s32.totalorder %s15, 1
      %p122 = scmp.ne.s32.totalorder %s117, %s119
      %p123 = scmp.eq.s32.totalorder %s15, 0
      %p124 = por %p122, %p123
      %p125 = scmp.ne.s32.totalorder %s117, %s119
      %p126 = scmp.eq.s32.totalorder %s20, 1
      %p127 = por %p125, %p126
      %p128 = scmp.ne.s32.totalorder %s119, %s120
      %p129 = scmp.eq.s32.totalorder %s20, 0
      %p130 = por %p128, %p129
      %p131 = scmp.ne.s32.totalorder %s119, %s120
      %p132 = scmp.eq.s32.totalorder %s21, 1
      %p133 = por %p131, %p132
      %p135 = scmp.ne.s32.totalorder %s120, %s134
      %p136 = scmp.eq.s32.totalorder %s21, 0
      %p137 = por %p135, %p136
      %s139 = sadd.s32 %s138, 1
      %p142 = scmp.eq.s32.totalorder %s15, 1
      %p143 = scmp.ne.s32.totalorder %s138, %s140
      %p144 = scmp.eq.s32.totalorder %s15, 0
      %p145 = por %p143, %p144
      %p146 = scmp.ne.s32.totalorder %s138, %s140
      %p147 = scmp.eq.s32.totalorder %s20, 1
      %p148 = por %p146, %p147
      %p149 = scmp.ne.s32.totalorder %s140, %s141
      %p150 = scmp.eq.s32.totalorder %s20, 0
      %p151 = por %p149, %p150
      %p152 = scmp.ne.s32.totalorder %s140, %s141
      %p153 = scmp.eq.s32.totalorder %s21, 1
      %p154 = por %p152, %p153
      %p156 = scmp.ne.s32.totalorder %s141, %s155
      %p157 = scmp.eq.s32.totalorder %s21, 0
      %p158 = por %p156, %p157
      %s159 = ssub.s32 %s15, %s22
      %p160 = scmp.eq.s32.totalorder %s159, 0
      %s162 = sadd.s32 %s161, 1
      %s163 = scalar_select %p160, %s161, %s162
      %p166 = pneg %p160
      %p167 = scmp.eq.s32.totalorder %s15, 1
      %p168 = por %p166, %p167
      %p169 = scmp.ne.s32.totalorder %s161, %s164
      %p170 = scmp.eq.s32.totalorder %s15, 0
      %p171 = por %p169, %p170
      %p172 = scmp.ne.s32.totalorder %s161, %s164
      %p173 = scmp.eq.s32.totalorder %s20, 1
      %p174 = por %p172, %p173
      %p175 = scmp.ne.s32.totalorder %s164, %s165
      %p176 = scmp.eq.s32.totalorder %s20, 0
      %p177 = por %p175, %p176
      %p178 = scmp.ne.s32.totalorder %s164, %s165
      %p179 = scmp.eq.s32.totalorder %s21, 1
      %p180 = por %p178, %p179
      %p182 = scmp.ne.s32.totalorder %s165, %s181
      %p183 = scmp.eq.s32.totalorder %s21, 0
      %p184 = por %p182, %p183
      %p185 = scmp.le.s32.totalorder 1, %s15
      %p186 = scmp.lt.s32.totalorder %s15, 3
      %p187 = pnand %p185, %p186
      %p188 = pneg %p187
      // Predicated region
      $region9: #{convmixer_maxpool_forward.11} parent=5 // pred_check
        _
      $region10: #{convmixer_maxpool_forward.11} parent=5 // pred_check_branch
        %190 = sbr.rel (%p187) target = $region12
      $region11: #{convmixer_maxpool_forward.11} parent=5 // pred_region
        %s191 = ssub.s32 %s15, 1
        // Predicated region
        $region13: #{convmixer_maxpool_forward.11} parent=11 // pred_check
          %p192 = pneg %p62
        $region14: #{convmixer_maxpool_forward.11} parent=11 // pred_check_branch
          %194 = sbr.rel (%p192) target = $region16
        $region15: #{convmixer_maxpool_forward.11} parent=11 // pred_region
          _
        $region16: #{convmixer_maxpool_forward.11} parent=11 // pred_fallthru
          _
        // Predicated region
        $region17: #{convmixer_maxpool_forward.11} parent=11 // pred_check
          %p195 = pneg %p83
        $region18: #{convmixer_maxpool_forward.11} parent=11 // pred_check_branch
          %197 = sbr.rel (%p195) target = $region20
        $region19: #{convmixer_maxpool_forward.11} parent=11 // pred_region
          _
        $region20: #{convmixer_maxpool_forward.11} parent=11 // pred_fallthru
          _
        // Predicated region
        $region21: #{convmixer_maxpool_forward.11} parent=11 // pred_check
          %p198 = pneg %p130
        $region22: #{convmixer_maxpool_forward.11} parent=11 // pred_check_branch
          %200 = sbr.rel (%p198) target = $region24
        $region23: #{convmixer_maxpool_forward.11} parent=11 // pred_region
          _
        $region24: #{convmixer_maxpool_forward.11} parent=11 // pred_fallthru
          _
        // Predicated region
        $region25: #{convmixer_maxpool_forward.11} parent=11 // pred_check
          %p201 = pneg %p151
        $region26: #{convmixer_maxpool_forward.11} parent=11 // pred_check_branch
          %203 = sbr.rel (%p201) target = $region28
        $region27: #{convmixer_maxpool_forward.11} parent=11 // pred_region
          _
        $region28: #{convmixer_maxpool_forward.11} parent=11 // pred_fallthru
          _
      $region12: #{convmixer_maxpool_forward.11} parent=5 // pred_fallthru
        _
      %p204 = scmp.lt.s32.totalorder %s15, 2
      // Predicated region
      $region29: #{convmixer_maxpool_forward.11} parent=5 // pred_check
        %p205 = pneg %p204
      $region30: #{convmixer_maxpool_forward.11} parent=5 // pred_check_branch
        %207 = sbr.rel (%p205) target = $region32
      $region31: #{convmixer_maxpool_forward.11} parent=5 // pred_region
        // Predicated region
        $region33: #{convmixer_maxpool_forward.11} parent=31 // pred_check
          %p208 = pneg %p35
        $region34: #{convmixer_maxpool_forward.11} parent=31 // pred_check_branch
          %210 = sbr.rel (%p208) target = $region36
        $region35: #{convmixer_maxpool_forward.11} parent=31 // pred_region
          %p211 = scmp.lt.s32.totalorder %s15, 1
          %s212 = scalar_select %p211, %s15, 1
          %s213 = smul.addr %s212, 4
          %s214 = smul.addr %s213, 2
          %s215 = scalar_lea.vmem %s0, %s214
        $region36: #{convmixer_maxpool_forward.11} parent=31 // pred_fallthru
          _
        // Predicated region
        $region37: #{convmixer_maxpool_forward.11} parent=31 // pred_check
          %p216 = pneg %p103
        $region38: #{convmixer_maxpool_forward.11} parent=31 // pred_check_branch
          %218 = sbr.rel (%p216) target = $region40
        $region39: #{convmixer_maxpool_forward.11} parent=31 // pred_region
          %p219 = scmp.lt.s32.totalorder %s15, 1
          %s220 = scalar_select %p219, %s15, 1
          %s221 = smul.addr %s220, 4
          %s222 = smul.addr %s221, 2
          %s223 = scalar_lea.vmem %s3, %s222
        $region40: #{convmixer_maxpool_forward.11} parent=31 // pred_fallthru
          _
      $region32: #{convmixer_maxpool_forward.11} parent=5 // pred_fallthru
        _
      %p224 = scmp.le.s32.totalorder 1, %s15
      %p225 = scmp.lt.s32.totalorder %s15, 3
      %p226 = pnand %p224, %p225
      %p227 = pneg %p226
      // Predicated region
      $region41: #{convmixer_maxpool_forward.11} parent=5 // pred_check
        _
      $region42: #{convmixer_maxpool_forward.11} parent=5 // pred_check_branch
        %229 = sbr.rel (%p226) target = $region44
      $region43: #{convmixer_maxpool_forward.11} parent=5 // pred_region
        %s230 = ssub.s32 %s15, 1
        %p231 = scmp.lt.s32.totalorder %s20, 1
        %s232 = scalar_select %p231, %s20, 1
        %s233 = smul.addr %s232, 4
        %s234 = smul.addr %s233, 2
        %s235 = scalar_lea.vmem %s0, %s234
        %p236 = pneg %p41
        %p237 = pneg %p38
        %p238 = pneg %p62
        %p239 = pneg %p59
        %p240 = pneg %p83
        %p241 = pneg %p80
        %p242 = scmp.lt.s32.totalorder %s20, 1
        %s243 = scalar_select %p242, %s20, 1
        %s244 = smul.addr %s243, 4
        %s245 = smul.addr %s244, 2
        %s246 = scalar_lea.vmem %s3, %s245
        %p247 = pneg %p109
        %p248 = pneg %p106
        %p249 = pneg %p130
        %p250 = pneg %p127
        %p251 = pneg %p151
        %p252 = pneg %p148
        %p253 = pneg %p177
        %p254 = pneg %p174
        %s255 = sand.u32 %s164, 1
        %s256 = scalar_lea.sflag [#allocation3], %s255
        %s257 = sand.u32 %s164, 1
        %s258 = smul.addr %s257, 4
        %s259 = scalar_lea.vmem [#allocation2], %s258
        %p260 = scmp.lt.s32.totalorder %s20, 1
        %s261 = scalar_select %p260, %s20, 1
        %s262 = smul.addr %s261, 4
        %s263 = smul.addr %s262, 2
        %s264 = scalar_lea.vmem %s0, %s263
        %p265 = scmp.lt.s32.totalorder %s20, 1
        %s266 = scalar_select %p265, %s20, 1
        %s267 = smul.addr %s266, 4
        %s268 = smul.addr %s267, 2
        %s269 = scalar_lea.vmem %s3, %s268
        %v270 = vld [vmem:[%s1] sm:$0x1]
        %v271 = vld [vmem:[%s2] sm:$0x1]
        %v272 = vld [vmem:[%s4] sm:$0x1]
        %v273 = vld [vmem:[%s5] sm:$0x1]
        %v274 = vld [vmem:[%s264] sm:$0x3]
        %v275 = vld [vmem:[%s264 + $0x2] sm:$0x3]
        %v276 = vld [vmem:[%s264 + $0x4] sm:$0x3]
        %v277 = vld [vmem:[%s264 + $0x6] sm:$0x3]
        %v279 = vlaneseq
        %v280 = vshrl.u32 %v279, 7
        %v281 = vsub.s32 0, %v280
        %v282 = vrot.slane %v270, %v281
        %v284 = vmul.f32 %v274, %v282
        %v285 = vmul.f32 %v275, %v282
        %v286 = vmul.f32 %v276, %v282
        %v287 = vmul.f32 %v277, %v282
        %v289 = vlaneseq
        %v290 = vshrl.u32 %v289, 7
        %v291 = vsub.s32 0, %v290
        %v292 = vrot.slane %v271, %v291
        %v294 = vadd.f32 %v284, %v292
        %v295 = vadd.f32 %v285, %v292
        %v296 = vadd.f32 %v286, %v292
        %v297 = vadd.f32 %v287, %v292
        %v298 = vld [vmem:[%s269] sm:$0x3]
        %v299 = vld [vmem:[%s269 + $0x2] sm:$0x3]
        %v300 = vld [vmem:[%s269 + $0x4] sm:$0x3]
        %v301 = vld [vmem:[%s269 + $0x6] sm:$0x3]
        %v303 = vlaneseq
        %v304 = vshrl.u32 %v303, 7
        %v305 = vsub.s32 0, %v304
        %v306 = vrot.slane %v272, %v305
        %v308 = vmul.f32 %v298, %v306
        %v309 = vmul.f32 %v299, %v306
        %v310 = vmul.f32 %v300, %v306
        %v311 = vmul.f32 %v301, %v306
        %v312 = vadd.f32 %v294, %v308
        %v313 = vadd.f32 %v295, %v309
        %v314 = vadd.f32 %v296, %v310
        %v315 = vadd.f32 %v297, %v311
        %v317 = vlaneseq
        %v318 = vshrl.u32 %v317, 7
        %v319 = vsub.s32 0, %v318
        %v320 = vrot.slane %v273, %v319
        %v322 = vadd.f32 %v312, %v320
        %v323 = vadd.f32 %v313, %v320
        %v324 = vadd.f32 %v314, %v320
        %v325 = vadd.f32 %v315, %v320
        %326 = vrot.lane.b32.xlu0 %v282, 16
        %v327 = vpop.permute.xlu0 %326
        %v329 = vmul.f32 %v274, %v327
        %v330 = vmul.f32 %v275, %v327
        %v331 = vmul.f32 %v276, %v327
        %v332 = vmul.f32 %v277, %v327
        %333 = vrot.lane.b32.xlu0 %v292, 16
        %v334 = vpop.permute.xlu0 %333
        %v336 = vadd.f32 %v329, %v334
        %v337 = vadd.f32 %v330, %v334
        %v338 = vadd.f32 %v331, %v334
        %v339 = vadd.f32 %v332, %v334
        %340 = vrot.lane.b32.xlu0 %v306, 16
        %v341 = vpop.permute.xlu0 %340
        %v343 = vmul.f32 %v298, %v341
        %v344 = vmul.f32 %v299, %v341
        %v345 = vmul.f32 %v300, %v341
        %v346 = vmul.f32 %v301, %v341
        %v347 = vadd.f32 %v336, %v343
        %v348 = vadd.f32 %v337, %v344
        %v349 = vadd.f32 %v338, %v345
        %v350 = vadd.f32 %v339, %v346
        %351 = vrot.lane.b32.xlu0 %v320, 16
        %v352 = vpop.permute.xlu0 %351
        %v354 = vadd.f32 %v347, %v352
        %v355 = vadd.f32 %v348, %v352
        %v356 = vadd.f32 %v349, %v352
        %v357 = vadd.f32 %v350, %v352
        %362 = vrot.lane.b32.xlu0 %v354, 112
        %v363 = vpop.permute.xlu0 %362
        %364 = vrot.lane.b32.xlu0 %v355, 112
        %v365 = vpop.permute.xlu0 %364
        %366 = vrot.lane.b32.xlu0 %v356, 112
        %v367 = vpop.permute.xlu0 %366
        %368 = vrot.lane.b32.xlu0 %v357, 112
        %v369 = vpop.permute.xlu0 %368
        %v374 = vmax.f32 %v322, %v363
        %v375 = vmax.f32 %v323, %v365
        %v376 = vmax.f32 %v324, %v367
        %v377 = vmax.f32 %v325, %v369
        %v378 = vmax.f32 %v374, %v375
        %v379 = vmax.f32 %v376, %v377
        %vm380 = vcmask 123904
        %381 = vst.msk [vmem:[%s259] sm:$0x3] %vm380, %v378
        %382 = vst.msk [vmem:[%s259 + $0x2] sm:$0x3] %vm380, %v379
        %s383 = sand.u32 %s164, 1
        %s384 = scalar_lea.sflag [#allocation3], %s383
        %s385 = sand.u32 %s164, 1
        %s386 = smul.addr %s385, 4
        %s387 = scalar_lea.vmem [#allocation2], %s386
        // Predicated region
        $region45: #{convmixer_maxpool_forward.11} parent=43 // pred_check
          %p388 = pneg %p174
        $region46: #{convmixer_maxpool_forward.11} parent=43 // pred_check_branch
          %390 = sbr.rel (%p388) target = $region48
        $region47: #{convmixer_maxpool_forward.11} parent=43 // pred_region
          %s392 = ssub.s32 64, 64
          %393 = vsyncadd %s384, %s392
          %s394 = smul.addr %s20, 2
          %s395 = smul.addr %s394, 32
          %s396 = scalar_lea.hbm %s6, %s395
          %s397 = sshll.u32 %s387, 4
          %s398 = int_to_ptr.vmem [resolvable:$true] %s397
          %403 = dma.vmem_to_hbm [thread:$0]  %s398, 64, %s396, %s384, 32, 32, 2
        $region48: #{convmixer_maxpool_forward.11} parent=43 // pred_fallthru
          _
      $region44: #{convmixer_maxpool_forward.11} parent=5 // pred_fallthru
        _
      %p404 = scmp.le.s32.totalorder 2, %s15
      // Predicated region
      $region49: #{convmixer_maxpool_forward.11} parent=5 // pred_check
        %p405 = pneg %p404
      $region50: #{convmixer_maxpool_forward.11} parent=5 // pred_check_branch
        %407 = sbr.rel (%p405) target = $region52
      $region51: #{convmixer_maxpool_forward.11} parent=5 // pred_region
        %s408 = ssub.s32 %s15, 2
        // Predicated region
        $region53: #{convmixer_maxpool_forward.11} parent=51 // pred_check
          %p409 = pneg %p180
        $region54: #{convmixer_maxpool_forward.11} parent=51 // pred_check_branch
          %411 = sbr.rel (%p409) target = $region56
        $region55: #{convmixer_maxpool_forward.11} parent=51 // pred_region
          %s412 = sand.u32 %s165, 1
          %s413 = scalar_lea.sflag [#allocation3], %s412
          %s414 = sand.u32 %s165, 1
          %s415 = smul.addr %s414, 4
          %s416 = scalar_lea.vmem [#allocation2], %s415
          %417 = dma.done %s413, 64
        $region56: #{convmixer_maxpool_forward.11} parent=51 // pred_fallthru
          _
      $region52: #{convmixer_maxpool_forward.11} parent=5 // pred_fallthru
        _
    $region6: #{convmixer_maxpool_forward.11} parent=1 // loop_footer
      %s19 = sadd.s32 1, %s15
    $region7: #{convmixer_maxpool_forward.11} parent=1 // loop_footer_branch
      %14 = sbr.rel target = $region3
    $region8: #{convmixer_maxpool_forward.11} parent=1 // loop_exit
      _
    %418 = vsyncpa [#allocation3], 1
    %s419 = scalar_lea.sflag [#allocation3], 1
    %420 = vsyncpa %s419, 1

</llo_original>
